<compile_context>
chip_gen: v5e
topology: v5e:2x2
jax: 0.10.0
libtpu: 0.0.40
codegen_flags: <defaults>
</compile_context>

<pallas_src>
import jax
import jax.numpy as jnp
from jax.experimental import pallas as pl
from jax.experimental.pallas import tpu as pltpu

LANE = 128
VMEM_LIMIT = 48 * 1024 * 1024   # safe on v7x (64 MiB physical), fine on v5e/v6e


def _round_up(x, m):
    return (x + m - 1) // m * m


def _pick_tile(n, preferred=1024):
    """Largest divisor of n (a multiple of 128) reachable by halving preferred."""
    t = min(preferred, n)
    while n % t != 0:
        t //= 2
    return t


def _row_tile(n, preferred=1024):
    t = _pick_tile(n, preferred)
    # v7x megacore: ensure >= 2 row tiles so both TensorCores get work
    if n // t < 2 and t >= 128:
        t //= 2
    return t


# ---------------------------------------------------------------------------
# Kernel 1: feature projection  HW = (norm_src * (X @ W)) -> bf16
# ---------------------------------------------------------------------------
def _project_kernel(x_ref, w_ref, ns_ref, hw_ref):
    hw = jnp.dot(x_ref[...], w_ref[...], preferred_element_type=jnp.float32)
    hw_ref[...] = (hw * ns_ref[...]).astype(hw_ref.dtype)


def project(x_bf16, w_bf16, norm_src):
    n, f_in = x_bf16.shape
    f_pad = w_bf16.shape[1]
    tm = _row_tile(n)
    return pl.pallas_call(
        _project_kernel,
        out_shape=jax.ShapeDtypeStruct((n, f_pad), jnp.bfloat16),
        grid_spec=pltpu.PrefetchScalarGridSpec(
            num_scalar_prefetch=0,
            grid=(n // tm,),
            in_specs=[
                pl.BlockSpec((tm, f_in), lambda i: (i, 0)),       # X rows
                pl.BlockSpec((f_in, f_pad), lambda i: (0, 0)),    # W (resident)
                pl.BlockSpec((tm, 1), lambda i: (i, 0)),          # norm_src
            ],
            out_specs=pl.BlockSpec((tm, f_pad), lambda i: (i, 0)),
        ),
        compiler_params=pltpu.CompilerParams(
            dimension_semantics=("parallel",),
            vmem_limit_bytes=VMEM_LIMIT,
        ),
    )(x_bf16, w_bf16, norm_src)


# ---------------------------------------------------------------------------
# Kernel 2: aggregation  out = norm_dst * (A @ HW) + b
# ---------------------------------------------------------------------------
def _aggregate_kernel(a_ref, hw_ref, nd_ref, b_ref, out_ref, acc_ref):
    k = pl.program_id(1)

    @pl.when(k == 0)
    def _():
        acc_ref[...] = jnp.zeros_like(acc_ref)

    # A is stored as int8 (0/1); upcast the tile to bf16 in VMEM right before
    # the MXU dot (v7x has no integer MXU; bf16 is exact for 0/1 values).
    a_tile = a_ref[...].astype(jnp.bfloat16)
    acc_ref[...] += jnp.dot(a_tile, hw_ref[...], preferred_element_type=jnp.float32)

    @pl.when(k == pl.num_programs(1) - 1)
    def _():
        # dst normalization + bias applied once at the end of the K reduction;
        # intermediate layers emit bf16, the final layer emits f32.
        out_ref[...] = (nd_ref[...] * acc_ref[...] + b_ref[...]).astype(out_ref.dtype)


def aggregate(a_i8, hw_bf16, norm_dst, bias, out_dtype):
    n = a_i8.shape[0]
    f_pad = hw_bf16.shape[1]
    tm = _row_tile(n)
    tk = _pick_tile(n)
    return pl.pallas_call(
        _aggregate_kernel,
        out_shape=jax.ShapeDtypeStruct((n, f_pad), out_dtype),
        grid_spec=pltpu.PrefetchScalarGridSpec(
            num_scalar_prefetch=0,
            grid=(n // tm, n // tk),
            in_specs=[
                pl.BlockSpec((tm, tk), lambda i, k: (i, k)),      # A tile (int8)
                pl.BlockSpec((tk, f_pad), lambda i, k: (k, 0)),   # HW src rows (bf16)
                pl.BlockSpec((tm, 1), lambda i, k: (i, 0)),       # norm_dst
                pl.BlockSpec((1, f_pad), lambda i, k: (0, 0)),    # bias
            ],
            out_specs=pl.BlockSpec((tm, f_pad), lambda i, k: (i, 0)),
            scratch_shapes=[pltpu.VMEM((tm, f_pad), jnp.float32)],
        ),
        compiler_params=pltpu.CompilerParams(
            dimension_semantics=("parallel", "arbitrary"),
            vmem_limit_bytes=VMEM_LIMIT,
        ),
    )(a_i8, hw_bf16, norm_dst, bias)


def _pad_cols(x, to):
    pad = to - x.shape[-1]
    return x if pad == 0 else jnp.pad(x, [(0, 0)] * (x.ndim - 1) + [(0, pad)])


@jax.jit
def gcn_forward(a, h, weights, biases):
    """a: (N,N) dense 0/1 adjacency, a[i,j]=1 iff edge j->i; h: (N,F_in) f32."""
    n_real = a.shape[0]
    num_classes = weights[-1].shape[1]
    f_pad = _round_up(num_classes, LANE)
    n = _round_up(n_real, LANE)

    # pad the graph to a 128-aligned node count: zero rows/cols are harmless
    # (degree clamp -> norm 1, zero features -> zero messages), sliced off below
    a = jnp.pad(a, ((0, n - n_real), (0, n - n_real)))
    x = jnp.pad(h, ((0, n - n_real), (0, 0)))

    # symmetric-norm factors, computed once (A is identical across layers)
    deg_in = jnp.sum(a, axis=1, keepdims=True)           # (N,1) in-degree (dst)
    deg_out = jnp.sum(a, axis=0).reshape(-1, 1)          # (N,1) out-degree (src)
    norm_dst = jax.lax.rsqrt(jnp.maximum(deg_in, 1.0))
    norm_src = jax.lax.rsqrt(jnp.maximum(deg_out, 1.0))

    a_i8 = a.astype(jnp.int8)                            # 0/1 -> 1 byte/elem stream

    num_layers = len(weights)
    for li, (w, b) in enumerate(zip(weights, biases)):
        # pad weight columns to a lane-dense width; for layers after the first,
        # also pad the input rows to match the (zero-padded) feature width
        w_p = _pad_cols(w, f_pad)
        if li > 0:
            w_p = jnp.pad(w_p, ((0, f_pad - w.shape[0]), (0, 0)))
        b_p = _pad_cols(b.reshape(1, -1), f_pad).astype(jnp.float32)

        hw = project(x.astype(jnp.bfloat16), w_p.astype(jnp.bfloat16), norm_src)
        out_dtype = jnp.float32 if li == num_layers - 1 else jnp.bfloat16
        x = aggregate(a_i8, hw, norm_dst, b_p, out_dtype)

    return x[:n_real, :num_classes]


def gcn_reference(a, h, weights, biases):
    """Pure-JAX f32 reference (DGL GraphConv norm='both', degree clamp >= 1)."""
    nd = jnp.maximum(jnp.sum(a, axis=1, keepdims=True), 1.0) ** -0.5   # (N,1)
    ns = jnp.maximum(jnp.sum(a, axis=0).reshape(-1, 1), 1.0) ** -0.5   # (N,1)
    x = h
    for w, b in zip(weights, biases):
        x = nd * (a @ (ns * (x @ w))) + b
    return x


def init_gcn_params(key, in_feats, num_classes, num_layers):
    """Deterministic xavier-uniform weights + zero biases (GraphConv defaults)."""
    dims = [in_feats] + [num_classes] * num_layers
    weights, biases = [], []
    for li in range(num_layers):
        key, wk = jax.random.split(key)
        fan_in, fan_out = dims[li], dims[li + 1]
        limit = (6.0 / (fan_in + fan_out)) ** 0.5
        weights.append(jax.random.uniform(
            wk, (fan_in, fan_out), jnp.float32, minval=-limit, maxval=limit))
        biases.append(jnp.zeros((1, fan_out), jnp.float32))
    return weights, biases


if __name__ == "__main__":
    N = 128            # number of graph nodes
    IN_FEATS = 64      # input feature dim
    NUM_CLASSES = 16   # synthetic stand-in for dataset.num_classes
    NUM_LAYERS = 3

    key = jax.random.PRNGKey(0)
    k_adj, k_feat, k_par = jax.random.split(key, 3)

    # random sparse-ish graph as a dense 0/1 adjacency (zero in-degree nodes are
    # fine: allow_zero_in_degree=True + degree clamp handle them)
    adjacency = jax.random.bernoulli(k_adj, 0.08, (N, N)).astype(jnp.float32)
    h = jax.random.normal(k_feat, (N, IN_FEATS), jnp.float32)

    weights, biases = init_gcn_params(k_par, IN_FEATS, NUM_CLASSES, NUM_LAYERS)

    out = gcn_forward(adjacency, h, weights, biases)
    out = jax.block_until_ready(out)
    assert out.shape == (N, NUM_CLASSES) and out.dtype == jnp.float32

    ref = gcn_reference(adjacency, h, weights, biases)
    max_err = float(jnp.max(jnp.abs(out - ref)))
    assert max_err < 5e-2, f"max abs error vs f32 reference: {max_err}"
    print("KERNEL_OK")
</pallas_src>

<mosaic_0001>
module attributes {stable_mosaic.version = 11 : i64} {
  func.func @_project_kernel(%arg0: i32, %arg1: memref<64x64xbf16, #tpu.memory_space<vmem>>, %arg2: memref<64x128xbf16, #tpu.memory_space<vmem>>, %arg3: memref<64x1xf32, #tpu.memory_space<vmem>>, %arg4: memref<64x128xbf16, #tpu.memory_space<vmem>>) attributes {dimension_semantics = [#tpu.dimension_semantics<parallel>], iteration_bounds = array<i64: 2>, scalar_prefetch = 0 : i64, scratch_operands = 0 : i64, tpu.core_type = #tpu.core_type<tc>, window_params = [{transform_indices = @transform_0, window_bounds = array<i64: 64, 64>}, {pipeline_mode = #tpu.pipeline_mode<synchronous>, transform_indices = @transform_1, window_bounds = array<i64: 64, 128>}, {transform_indices = @transform_2, window_bounds = array<i64: 64, 1>}, {transform_indices = @transform_3, window_bounds = array<i64: 64, 128>}]} {
    %c0 = arith.constant 0 : index
    %c0_0 = arith.constant 0 : index
    %0 = vector.load %arg1[%c0, %c0_0] : memref<64x64xbf16, #tpu.memory_space<vmem>>, vector<64x64xbf16>
    %c0_1 = arith.constant 0 : index
    %c0_2 = arith.constant 0 : index
    %1 = vector.load %arg2[%c0_1, %c0_2] : memref<64x128xbf16, #tpu.memory_space<vmem>>, vector<64x128xbf16>
    %cst = arith.constant dense<0.000000e+00> : vector<64x128xf32>
    %2 = tpu.matmul %0, %1, %cst {dimension_numbers = #tpu.dot_dimension_numbers<[1], [0], [0], [1], [0, 0, 1, 1], [], []>} : vector<64x64xbf16>, vector<64x128xbf16>, vector<64x128xf32> -> vector<64x128xf32>
    %c0_3 = arith.constant 0 : index
    %c0_4 = arith.constant 0 : index
    %3 = vector.load %arg3[%c0_3, %c0_4] : memref<64x1xf32, #tpu.memory_space<vmem>>, vector<64x1xf32>
    %4 = vector.broadcast %3 : vector<64x1xf32> to vector<64x128xf32>
    %5 = arith.mulf %2, %4 : vector<64x128xf32>
    %6 = arith.truncf %5 : vector<64x128xf32> to vector<64x128xbf16>
    %c0_5 = arith.constant 0 : index
    %c0_6 = arith.constant 0 : index
    %7 = vector.load %arg4[%c0_5, %c0_6] : memref<64x128xbf16, #tpu.memory_space<vmem>>, vector<64x128xbf16>
    tpu.vector_store %arg4[%c0_5, %c0_6], %6 {strides = array<i32>} : memref<64x128xbf16, #tpu.memory_space<vmem>>, vector<64x128xbf16>,
    return
  }
  func.func @transform_0(%arg0: i32) -> (i32, i32) {
    %c0_i32 = arith.constant 0 : i32
    %c0_i32_0 = arith.constant 0 : i32
    return %arg0, %c0_i32 : i32, i32
  }
  func.func @transform_1(%arg0: i32) -> (i32, i32) {
    %c0_i32 = arith.constant 0 : i32
    %c0_i32_0 = arith.constant 0 : i32
    %c0_i32_1 = arith.constant 0 : i32
    return %c0_i32, %c0_i32_0 : i32, i32
  }
  func.func @transform_2(%arg0: i32) -> (i32, i32) {
    %c0_i32 = arith.constant 0 : i32
    %c0_i32_0 = arith.constant 0 : i32
    return %arg0, %c0_i32 : i32, i32
  }
  func.func @transform_3(%arg0: i32) -> (i32, i32) {
    %c0_i32 = arith.constant 0 : i32
    %c0_i32_0 = arith.constant 0 : i32
    return %arg0, %c0_i32 : i32, i32
  }
}

module attributes {stable_mosaic.version = 11 : i64} {
  func.func @_aggregate_kernel(%arg0: i32, %arg1: i32, %arg2: memref<64x128xi8, #tpu.memory_space<vmem>>, %arg3: memref<128x128xbf16, #tpu.memory_space<vmem>>, %arg4: memref<64x1xf32, #tpu.memory_space<vmem>>, %arg5: memref<1x128xf32, #tpu.memory_space<vmem>>, %arg6: memref<64x128xbf16, #tpu.memory_space<vmem>>, %arg7: memref<64x128xf32, #tpu.memory_space<vmem>>) attributes {dimension_semantics = [#tpu.dimension_semantics<parallel>, #tpu.dimension_semantics<arbitrary>], iteration_bounds = array<i64: 2, 1>, scalar_prefetch = 0 : i64, scratch_operands = 1 : i64, tpu.core_type = #tpu.core_type<tc>, window_params = [{transform_indices = @transform_0, window_bounds = array<i64: 64, 128>}, {transform_indices = @transform_1, window_bounds = array<i64: 128, 128>}, {transform_indices = @transform_2, window_bounds = array<i64: 64, 1>}, {pipeline_mode = #tpu.pipeline_mode<synchronous>, transform_indices = @transform_3, window_bounds = array<i64: 1, 128>}, {transform_indices = @transform_4, window_bounds = array<i64: 64, 128>}]} {
    %c0_i32 = arith.constant 0 : i32
    %0 = arith.cmpi eq, %arg1, %c0_i32 : i32
    %1 = arith.extui %0 : i1 to i32
    %c0_i32_0 = arith.constant 0 : i32
    %2 = arith.cmpi ne, %1, %c0_i32_0 : i32
    scf.if %2 {
      %cst_10 = arith.constant 0.000000e+00 : f32
      %13 = vector.broadcast %cst_10 : f32 to vector<64x128xf32>
      %c0_11 = arith.constant 0 : index
      %c0_12 = arith.constant 0 : index
      %14 = vector.load %arg7[%c0_11, %c0_12] : memref<64x128xf32, #tpu.memory_space<vmem>>, vector<64x128xf32>
      tpu.vector_store %arg7[%c0_11, %c0_12], %13 {strides = array<i32>} : memref<64x128xf32, #tpu.memory_space<vmem>>, vector<64x128xf32>,
    } else {
    }
    %c0 = arith.constant 0 : index
    %c0_1 = arith.constant 0 : index
    %3 = vector.load %arg2[%c0, %c0_1] : memref<64x128xi8, #tpu.memory_space<vmem>>, vector<64x128xi8>
    %4 = arith.sitofp %3 : vector<64x128xi8> to vector<64x128xbf16>
    %c0_2 = arith.constant 0 : index
    %c0_3 = arith.constant 0 : index
    %5 = vector.load %arg7[%c0_2, %c0_3] : memref<64x128xf32, #tpu.memory_space<vmem>>, vector<64x128xf32>
    %c0_4 = arith.constant 0 : index
    %c0_5 = arith.constant 0 : index
    %6 = vector.load %arg3[%c0_4, %c0_5] : memref<128x128xbf16, #tpu.memory_space<vmem>>, vector<128x128xbf16>
    %cst = arith.constant dense<0.000000e+00> : vector<64x128xf32>
    %7 = tpu.matmul %4, %6, %cst {dimension_numbers = #tpu.dot_dimension_numbers<[1], [0], [0], [1], [0, 0, 1, 1], [], []>} : vector<64x128xbf16>, vector<128x128xbf16>, vector<64x128xf32> -> vector<64x128xf32>
    %8 = arith.addf %5, %7 : vector<64x128xf32>
    %c0_6 = arith.constant 0 : index
    %c0_7 = arith.constant 0 : index
    %9 = vector.load %arg7[%c0_6, %c0_7] : memref<64x128xf32, #tpu.memory_space<vmem>>, vector<64x128xf32>
    tpu.vector_store %arg7[%c0_6, %c0_7], %8 {strides = array<i32>} : memref<64x128xf32, #tpu.memory_space<vmem>>, vector<64x128xf32>,
    %c0_i32_8 = arith.constant 0 : i32
    %10 = arith.cmpi eq, %arg1, %c0_i32_8 : i32
    %11 = arith.extui %10 : i1 to i32
    %c0_i32_9 = arith.constant 0 : i32
    %12 = arith.cmpi ne, %11, %c0_i32_9 : i32
    scf.if %12 {
      %c0_10 = arith.constant 0 : index
      %c0_11 = arith.constant 0 : index
      %13 = vector.load %arg4[%c0_10, %c0_11] : memref<64x1xf32, #tpu.memory_space<vmem>>, vector<64x1xf32>
      %c0_12 = arith.constant 0 : index
      %c0_13 = arith.constant 0 : index
      %14 = vector.load %arg7[%c0_12, %c0_13] : memref<64x128xf32, #tpu.memory_space<vmem>>, vector<64x128xf32>
      %15 = vector.broadcast %13 : vector<64x1xf32> to vector<64x128xf32>
      %16 = arith.mulf %15, %14 : vector<64x128xf32>
      %c0_14 = arith.constant 0 : index
      %c0_15 = arith.constant 0 : index
      %17 = vector.load %arg5[%c0_14, %c0_15] : memref<1x128xf32, #tpu.memory_space<vmem>>, vector<1x128xf32>
      %18 = vector.broadcast %17 : vector<1x128xf32> to vector<64x128xf32>
      %19 = arith.addf %16, %18 : vector<64x128xf32>
      %20 = arith.truncf %19 : vector<64x128xf32> to vector<64x128xbf16>
      %c0_16 = arith.constant 0 : index
      %c0_17 = arith.constant 0 : index
      %21 = vector.load %arg6[%c0_16, %c0_17] : memref<64x128xbf16, #tpu.memory_space<vmem>>, vector<64x128xbf16>
      tpu.vector_store %arg6[%c0_16, %c0_17], %20 {strides = array<i32>} : memref<64x128xbf16, #tpu.memory_space<vmem>>, vector<64x128xbf16>,
    } else {
    }
    return
  }
  func.func @transform_0(%arg0: i32, %arg1: i32) -> (i32, i32) {
    %c0_i32 = arith.constant 0 : i32
    return %arg0, %arg1 : i32, i32
  }
  func.func @transform_1(%arg0: i32, %arg1: i32) -> (i32, i32) {
    %c0_i32 = arith.constant 0 : i32
    %c0_i32_0 = arith.constant 0 : i32
    return %arg1, %c0_i32 : i32, i32
  }
  func.func @transform_2(%arg0: i32, %arg1: i32) -> (i32, i32) {
    %c0_i32 = arith.constant 0 : i32
    %c0_i32_0 = arith.constant 0 : i32
    return %arg0, %c0_i32 : i32, i32
  }
  func.func @transform_3(%arg0: i32, %arg1: i32) -> (i32, i32) {
    %c0_i32 = arith.constant 0 : i32
    %c0_i32_0 = arith.constant 0 : i32
    %c0_i32_1 = arith.constant 0 : i32
    return %c0_i32, %c0_i32_0 : i32, i32
  }
  func.func @transform_4(%arg0: i32, %arg1: i32) -> (i32, i32) {
    %c0_i32 = arith.constant 0 : i32
    %c0_i32_0 = arith.constant 0 : i32
    return %arg0, %c0_i32 : i32, i32
  }
}

module attributes {stable_mosaic.version = 11 : i64} {
  func.func @_project_kernel(%arg0: i32, %arg1: memref<64x128xbf16, #tpu.memory_space<vmem>>, %arg2: memref<128x128xbf16, #tpu.memory_space<vmem>>, %arg3: memref<64x1xf32, #tpu.memory_space<vmem>>, %arg4: memref<64x128xbf16, #tpu.memory_space<vmem>>) attributes {dimension_semantics = [#tpu.dimension_semantics<parallel>], iteration_bounds = array<i64: 2>, scalar_prefetch = 0 : i64, scratch_operands = 0 : i64, tpu.core_type = #tpu.core_type<tc>, window_params = [{transform_indices = @transform_0, window_bounds = array<i64: 64, 128>}, {pipeline_mode = #tpu.pipeline_mode<synchronous>, transform_indices = @transform_1, window_bounds = array<i64: 128, 128>}, {transform_indices = @transform_2, window_bounds = array<i64: 64, 1>}, {transform_indices = @transform_3, window_bounds = array<i64: 64, 128>}]} {
    %c0 = arith.constant 0 : index
    %c0_0 = arith.constant 0 : index
    %0 = vector.load %arg1[%c0, %c0_0] : memref<64x128xbf16, #tpu.memory_space<vmem>>, vector<64x128xbf16>
    %c0_1 = arith.constant 0 : index
    %c0_2 = arith.constant 0 : index
    %1 = vector.load %arg2[%c0_1, %c0_2] : memref<128x128xbf16, #tpu.memory_space<vmem>>, vector<128x128xbf16>
    %cst = arith.constant dense<0.000000e+00> : vector<64x128xf32>
    %2 = tpu.matmul %0, %1, %cst {dimension_numbers = #tpu.dot_dimension_numbers<[1], [0], [0], [1], [0, 0, 1, 1], [], []>} : vector<64x128xbf16>, vector<128x128xbf16>, vector<64x128xf32> -> vector<64x128xf32>
    %c0_3 = arith.constant 0 : index
    %c0_4 = arith.constant 0 : index
    %3 = vector.load %arg3[%c0_3, %c0_4] : memref<64x1xf32, #tpu.memory_space<vmem>>, vector<64x1xf32>
    %4 = vector.broadcast %3 : vector<64x1xf32> to vector<64x128xf32>
    %5 = arith.mulf %2, %4 : vector<64x128xf32>
    %6 = arith.truncf %5 : vector<64x128xf32> to vector<64x128xbf16>
    %c0_5 = arith.constant 0 : index
    %c0_6 = arith.constant 0 : index
    %7 = vector.load %arg4[%c0_5, %c0_6] : memref<64x128xbf16, #tpu.memory_space<vmem>>, vector<64x128xbf16>
    tpu.vector_store %arg4[%c0_5, %c0_6], %6 {strides = array<i32>} : memref<64x128xbf16, #tpu.memory_space<vmem>>, vector<64x128xbf16>,
    return
  }
  func.func @transform_0(%arg0: i32) -> (i32, i32) {
    %c0_i32 = arith.constant 0 : i32
    %c0_i32_0 = arith.constant 0 : i32
    return %arg0, %c0_i32 : i32, i32
  }
  func.func @transform_1(%arg0: i32) -> (i32, i32) {
    %c0_i32 = arith.constant 0 : i32
    %c0_i32_0 = arith.constant 0 : i32
    %c0_i32_1 = arith.constant 0 : i32
    return %c0_i32, %c0_i32_0 : i32, i32
  }
  func.func @transform_2(%arg0: i32) -> (i32, i32) {
    %c0_i32 = arith.constant 0 : i32
    %c0_i32_0 = arith.constant 0 : i32
    return %arg0, %c0_i32 : i32, i32
  }
  func.func @transform_3(%arg0: i32) -> (i32, i32) {
    %c0_i32 = arith.constant 0 : i32
    %c0_i32_0 = arith.constant 0 : i32
    return %arg0, %c0_i32 : i32, i32
  }
}

module attributes {stable_mosaic.version = 11 : i64} {
  func.func @_aggregate_kernel(%arg0: i32, %arg1: i32, %arg2: memref<64x128xi8, #tpu.memory_space<vmem>>, %arg3: memref<128x128xbf16, #tpu.memory_space<vmem>>, %arg4: memref<64x1xf32, #tpu.memory_space<vmem>>, %arg5: memref<1x128xf32, #tpu.memory_space<vmem>>, %arg6: memref<64x128xf32, #tpu.memory_space<vmem>>, %arg7: memref<64x128xf32, #tpu.memory_space<vmem>>) attributes {dimension_semantics = [#tpu.dimension_semantics<parallel>, #tpu.dimension_semantics<arbitrary>], iteration_bounds = array<i64: 2, 1>, scalar_prefetch = 0 : i64, scratch_operands = 1 : i64, tpu.core_type = #tpu.core_type<tc>, window_params = [{transform_indices = @transform_0, window_bounds = array<i64: 64, 128>}, {transform_indices = @transform_1, window_bounds = array<i64: 128, 128>}, {transform_indices = @transform_2, window_bounds = array<i64: 64, 1>}, {pipeline_mode = #tpu.pipeline_mode<synchronous>, transform_indices = @transform_3, window_bounds = array<i64: 1, 128>}, {transform_indices = @transform_4, window_bounds = array<i64: 64, 128>}]} {
    %c0_i32 = arith.constant 0 : i32
    %0 = arith.cmpi eq, %arg1, %c0_i32 : i32
    %1 = arith.extui %0 : i1 to i32
    %c0_i32_0 = arith.constant 0 : i32
    %2 = arith.cmpi ne, %1, %c0_i32_0 : i32
    scf.if %2 {
      %cst_10 = arith.constant 0.000000e+00 : f32
      %13 = vector.broadcast %cst_10 : f32 to vector<64x128xf32>
      %c0_11 = arith.constant 0 : index
      %c0_12 = arith.constant 0 : index
      %14 = vector.load %arg7[%c0_11, %c0_12] : memref<64x128xf32, #tpu.memory_space<vmem>>, vector<64x128xf32>
      tpu.vector_store %arg7[%c0_11, %c0_12], %13 {strides = array<i32>} : memref<64x128xf32, #tpu.memory_space<vmem>>, vector<64x128xf32>,
    } else {
    }
    %c0 = arith.constant 0 : index
    %c0_1 = arith.constant 0 : index
    %3 = vector.load %arg2[%c0, %c0_1] : memref<64x128xi8, #tpu.memory_space<vmem>>, vector<64x128xi8>
    %4 = arith.sitofp %3 : vector<64x128xi8> to vector<64x128xbf16>
    %c0_2 = arith.constant 0 : index
    %c0_3 = arith.constant 0 : index
    %5 = vector.load %arg7[%c0_2, %c0_3] : memref<64x128xf32, #tpu.memory_space<vmem>>, vector<64x128xf32>
    %c0_4 = arith.constant 0 : index
    %c0_5 = arith.constant 0 : index
    %6 = vector.load %arg3[%c0_4, %c0_5] : memref<128x128xbf16, #tpu.memory_space<vmem>>, vector<128x128xbf16>
    %cst = arith.constant dense<0.000000e+00> : vector<64x128xf32>
    %7 = tpu.matmul %4, %6, %cst {dimension_numbers = #tpu.dot_dimension_numbers<[1], [0], [0], [1], [0, 0, 1, 1], [], []>} : vector<64x128xbf16>, vector<128x128xbf16>, vector<64x128xf32> -> vector<64x128xf32>
    %8 = arith.addf %5, %7 : vector<64x128xf32>
    %c0_6 = arith.constant 0 : index
    %c0_7 = arith.constant 0 : index
    %9 = vector.load %arg7[%c0_6, %c0_7] : memref<64x128xf32, #tpu.memory_space<vmem>>, vector<64x128xf32>
    tpu.vector_store %arg7[%c0_6, %c0_7], %8 {strides = array<i32>} : memref<64x128xf32, #tpu.memory_space<vmem>>, vector<64x128xf32>,
    %c0_i32_8 = arith.constant 0 : i32
    %10 = arith.cmpi eq, %arg1, %c0_i32_8 : i32
    %11 = arith.extui %10 : i1 to i32
    %c0_i32_9 = arith.constant 0 : i32
    %12 = arith.cmpi ne, %11, %c0_i32_9 : i32
    scf.if %12 {
      %c0_10 = arith.constant 0 : index
      %c0_11 = arith.constant 0 : index
      %13 = vector.load %arg4[%c0_10, %c0_11] : memref<64x1xf32, #tpu.memory_space<vmem>>, vector<64x1xf32>
      %c0_12 = arith.constant 0 : index
      %c0_13 = arith.constant 0 : index
      %14 = vector.load %arg7[%c0_12, %c0_13] : memref<64x128xf32, #tpu.memory_space<vmem>>, vector<64x128xf32>
      %15 = vector.broadcast %13 : vector<64x1xf32> to vector<64x128xf32>
      %16 = arith.mulf %15, %14 : vector<64x128xf32>
      %c0_14 = arith.constant 0 : index
      %c0_15 = arith.constant 0 : index
      %17 = vector.load %arg5[%c0_14, %c0_15] : memref<1x128xf32, #tpu.memory_space<vmem>>, vector<1x128xf32>
      %18 = vector.broadcast %17 : vector<1x128xf32> to vector<64x128xf32>
      %19 = arith.addf %16, %18 : vector<64x128xf32>
      %c0_16 = arith.constant 0 : index
      %c0_17 = arith.constant 0 : index
      %20 = vector.load %arg6[%c0_16, %c0_17] : memref<64x128xf32, #tpu.memory_space<vmem>>, vector<64x128xf32>
      tpu.vector_store %arg6[%c0_16, %c0_17], %19 {strides = array<i32>} : memref<64x128xf32, #tpu.memory_space<vmem>>, vector<64x128xf32>,
    } else {
    }
    return
  }
  func.func @transform_0(%arg0: i32, %arg1: i32) -> (i32, i32) {
    %c0_i32 = arith.constant 0 : i32
    return %arg0, %arg1 : i32, i32
  }
  func.func @transform_1(%arg0: i32, %arg1: i32) -> (i32, i32) {
    %c0_i32 = arith.constant 0 : i32
    %c0_i32_0 = arith.constant 0 : i32
    return %arg1, %c0_i32 : i32, i32
  }
  func.func @transform_2(%arg0: i32, %arg1: i32) -> (i32, i32) {
    %c0_i32 = arith.constant 0 : i32
    %c0_i32_0 = arith.constant 0 : i32
    return %arg0, %c0_i32 : i32, i32
  }
  func.func @transform_3(%arg0: i32, %arg1: i32) -> (i32, i32) {
    %c0_i32 = arith.constant 0 : i32
    %c0_i32_0 = arith.constant 0 : i32
    %c0_i32_1 = arith.constant 0 : i32
    return %c0_i32, %c0_i32_0 : i32, i32
  }
  func.func @transform_4(%arg0: i32, %arg1: i32) -> (i32, i32) {
    %c0_i32 = arith.constant 0 : i32
    %c0_i32_0 = arith.constant 0 : i32
    return %arg0, %c0_i32 : i32, i32
  }
}

</mosaic_0001>

<llo_original>
// kernel: gcn_forward.6
$region0: #{gcn_forward.6}
  #allocation0 [shape = 'u32[]', space=smem, size = 0x4, offset = 0x4, fixed_abs, tag = 'smem constant byte address 0x4 - core index']
  #allocation1 [shape = 'u32[72,128]{1,0:T(1,128)}', space=vmem, size = 0x9000, scoped, tag = 'internal scratch']
  %s0 = inlined_call_operand.vmem [shape: bf16[128,64], index: 0, kind: input, shape index: {}]
  %s1 = inlined_call_operand.vmem [shape: bf16[64,128], index: 1, kind: input, shape index: {}]
  %s2 = inlined_call_operand.vmem [shape: f32[128,1], index: 2, kind: input, shape index: {}]
  %s3 = inlined_call_operand.vmem [shape: bf16[128,128], index: 3, kind: output, shape index: {}]
  %s4 = sld [smem:[#allocation0]]
  $region45: #{gcn_forward.6} parent=0
    _
  %s6 = ssub.s32 1, %s4
  %s7 = scalar_select 0, %s6, %s4
  loop: start=0, step=1, limit=4
  $region2: #{gcn_forward.6} parent=0 // loop_pre_header
    _
  $region3: #{gcn_forward.6} parent=0 // loop_header
    %s9 = sphi 0, %s13
    %p10 = scmp.ge.s32.totalorder %s9, 4
    %s19 = sphi 0, %s21
    %s22 = sphi 0, %s19
    %s23 = sphi 0, %s22
    %s39 = sphi 0, %s23
    %s43 = sphi 0, %s43
    %s45 = sphi 0, %s43
    %s46 = sphi 0, %s45
    %s60 = sphi 0, %s46
    %s66 = sphi 0, %s68
    %s69 = sphi 0, %s66
    %s70 = sphi 0, %s69
    %s86 = sphi 0, %s70
    %s92 = sphi 0, %s94
    %s95 = sphi 0, %s92
    %s96 = sphi 0, %s95
    %s112 = sphi 0, %s96
  $region4: #{gcn_forward.6} parent=0 // loop_header_branch
    %12 = sbr.rel (%p10) target = $region8
  $region5: #{gcn_forward.6} parent=0 // loop_body
    %s14 = ssub.s32 %s9, 1
    %s15 = ssub.s32 %s9, 2
    %s16 = sadd.s32 %s9, 1
    %s17 = ssub.s32 %s9, %s16
    %p18 = scmp.eq.s32.totalorder %s17, 0
    %s20 = sadd.s32 %s19, 1
    %s21 = scalar_select %p18, %s19, %s20
    %p24 = pneg %p18
    %p25 = scmp.eq.s32.totalorder %s9, 1
    %p26 = por %p24, %p25
    %p27 = scmp.ne.s32.totalorder %s19, %s22
    %p28 = scmp.eq.s32.totalorder %s9, 0
    %p29 = por %p27, %p28
    %p30 = scmp.ne.s32.totalorder %s19, %s22
    %p31 = scmp.eq.s32.totalorder %s14, 1
    %p32 = por %p30, %p31
    %p33 = scmp.ne.s32.totalorder %s22, %s23
    %p34 = scmp.eq.s32.totalorder %s14, 0
    %p35 = por %p33, %p34
    %p36 = scmp.ne.s32.totalorder %s22, %s23
    %p37 = scmp.eq.s32.totalorder %s15, 1
    %p38 = por %p36, %p37
    %p40 = scmp.ne.s32.totalorder %s23, %s39
    %p41 = scmp.eq.s32.totalorder %s15, 0
    %p42 = por %p40, %p41
    %s44 = sadd.s32 %s43, 1
    %p47 = scmp.eq.s32.totalorder %s9, 1
    %p48 = scmp.ne.s32.totalorder %s43, %s45
    %p49 = scmp.eq.s32.totalorder %s9, 0
    %p50 = por %p48, %p49
    %p51 = scmp.ne.s32.totalorder %s43, %s45
    %p52 = scmp.eq.s32.totalorder %s14, 1
    %p53 = por %p51, %p52
    %p54 = scmp.ne.s32.totalorder %s45, %s46
    %p55 = scmp.eq.s32.totalorder %s14, 0
    %p56 = por %p54, %p55
    %p57 = scmp.ne.s32.totalorder %s45, %s46
    %p58 = scmp.eq.s32.totalorder %s15, 1
    %p59 = por %p57, %p58
    %p61 = scmp.ne.s32.totalorder %s46, %s60
    %p62 = scmp.eq.s32.totalorder %s15, 0
    %p63 = por %p61, %p62
    %s64 = ssub.s32 %s9, %s16
    %p65 = scmp.eq.s32.totalorder %s64, 0
    %s67 = sadd.s32 %s66, 1
    %s68 = scalar_select %p65, %s66, %s67
    %p71 = pneg %p65
    %p72 = scmp.eq.s32.totalorder %s9, 1
    %p73 = por %p71, %p72
    %p74 = scmp.ne.s32.totalorder %s66, %s69
    %p75 = scmp.eq.s32.totalorder %s9, 0
    %p76 = por %p74, %p75
    %p77 = scmp.ne.s32.totalorder %s66, %s69
    %p78 = scmp.eq.s32.totalorder %s14, 1
    %p79 = por %p77, %p78
    %p80 = scmp.ne.s32.totalorder %s69, %s70
    %p81 = scmp.eq.s32.totalorder %s14, 0
    %p82 = por %p80, %p81
    %p83 = scmp.ne.s32.totalorder %s69, %s70
    %p84 = scmp.eq.s32.totalorder %s15, 1
    %p85 = por %p83, %p84
    %p87 = scmp.ne.s32.totalorder %s70, %s86
    %p88 = scmp.eq.s32.totalorder %s15, 0
    %p89 = por %p87, %p88
    %s90 = ssub.s32 %s9, %s16
    %p91 = scmp.eq.s32.totalorder %s90, 0
    %s93 = sadd.s32 %s92, 1
    %s94 = scalar_select %p91, %s92, %s93
    %p97 = pneg %p91
    %p98 = scmp.eq.s32.totalorder %s9, 1
    %p99 = por %p97, %p98
    %p100 = scmp.ne.s32.totalorder %s92, %s95
    %p101 = scmp.eq.s32.totalorder %s9, 0
    %p102 = por %p100, %p101
    %p103 = scmp.ne.s32.totalorder %s92, %s95
    %p104 = scmp.eq.s32.totalorder %s14, 1
    %p105 = por %p103, %p104
    %p106 = scmp.ne.s32.totalorder %s95, %s96
    %p107 = scmp.eq.s32.totalorder %s14, 0
    %p108 = por %p106, %p107
    %p109 = scmp.ne.s32.totalorder %s95, %s96
    %p110 = scmp.eq.s32.totalorder %s15, 1
    %p111 = por %p109, %p110
    %p113 = scmp.ne.s32.totalorder %s96, %s112
    %p114 = scmp.eq.s32.totalorder %s15, 0
    %p115 = por %p113, %p114
    %p116 = scmp.le.s32.totalorder 1, %s9
    %p117 = scmp.lt.s32.totalorder %s9, 3
    %p118 = pnand %p116, %p117
    %p119 = pneg %p118
    // Predicated region
    $region9: #{gcn_forward.6} parent=5 // pred_check
      _
    $region10: #{gcn_forward.6} parent=5 // pred_check_branch
      %121 = sbr.rel (%p118) target = $region12
    $region11: #{gcn_forward.6} parent=5 // pred_region
      %s122 = ssub.s32 %s9, 1
      // Predicated region
      $region13: #{gcn_forward.6} parent=11 // pred_check
        %p123 = pneg %p56
      $region14: #{gcn_forward.6} parent=11 // pred_check_branch
        %125 = sbr.rel (%p123) target = $region16
      $region15: #{gcn_forward.6} parent=11 // pred_region
        _
      $region16: #{gcn_forward.6} parent=11 // pred_fallthru
        _
    $region12: #{gcn_forward.6} parent=5 // pred_fallthru
      _
    %p126 = scmp.lt.s32.totalorder %s9, 2
    // Predicated region
    $region17: #{gcn_forward.6} parent=5 // pred_check
      %p127 = pneg %p126
    $region18: #{gcn_forward.6} parent=5 // pred_check_branch
      %129 = sbr.rel (%p127) target = $region20
    $region19: #{gcn_forward.6} parent=5 // pred_region
      // Predicated region
      $region21: #{gcn_forward.6} parent=19 // pred_check
        %p130 = pneg %p29
      $region22: #{gcn_forward.6} parent=19 // pred_check_branch
        %132 = sbr.rel (%p130) target = $region24
      $region23: #{gcn_forward.6} parent=19 // pred_region
        %s133 = smul.u32 8, %s9
        %p134 = scmp.lt.s32.totalorder %s133, 15
        %s135 = scalar_select %p134, %s133, 15
        %s136 = smul.addr %s135, 4
        %s137 = scalar_lea.vmem %s0, %s136
        %s138 = smul.u32 8, %s9
      $region24: #{gcn_forward.6} parent=19 // pred_fallthru
        _
      // Predicated region
      $region25: #{gcn_forward.6} parent=19 // pred_check
        %p139 = pneg %p76
      $region26: #{gcn_forward.6} parent=19 // pred_check_branch
        %141 = sbr.rel (%p139) target = $region28
      $region27: #{gcn_forward.6} parent=19 // pred_region
        %s142 = smul.u32 8, %s9
        %p143 = scmp.lt.s32.totalorder %s142, 15
        %s144 = scalar_select %p143, %s142, 15
        %s145 = smul.addr %s144, 8
        %s146 = scalar_lea.vmem %s2, %s145
        %s147 = smul.u32 8, %s9
      $region28: #{gcn_forward.6} parent=19 // pred_fallthru
        _
    $region20: #{gcn_forward.6} parent=5 // pred_fallthru
      _
    %p148 = scmp.le.s32.totalorder 1, %s9
    %p149 = scmp.lt.s32.totalorder %s9, 3
    %p150 = pnand %p148, %p149
    %p151 = pneg %p150
    // Predicated region
    $region29: #{gcn_forward.6} parent=5 // pred_check
      _
    $region30: #{gcn_forward.6} parent=5 // pred_check_branch
      %153 = sbr.rel (%p150) target = $region32
    $region31: #{gcn_forward.6} parent=5 // pred_region
      %s154 = ssub.s32 %s9, 1
      %s155 = smul.u32 8, %s14
      %p156 = scmp.lt.s32.totalorder %s155, 15
      %s157 = scalar_select %p156, %s155, 15
      %s158 = smul.addr %s157, 4
      %s159 = scalar_lea.vmem %s0, %s158
      %p160 = pneg %p35
      %p161 = pneg %p32
      %p162 = pneg %p56
      %p163 = pneg %p53
      %s164 = smul.u32 8, %s14
      %p165 = scmp.lt.s32.totalorder %s164, 15
      %s166 = scalar_select %p165, %s164, 15
      %s167 = smul.addr %s166, 8
      %s168 = scalar_lea.vmem %s2, %s167
      %p169 = pneg %p82
      %p170 = pneg %p79
      %p171 = pneg %p108
      %p172 = pneg %p105
      %s173 = smul.u32 8, %s14
      %p174 = scmp.lt.s32.totalorder %s173, 15
      %s175 = scalar_select %p174, %s173, 15
      %s176 = smul.addr %s175, 4
      %s177 = scalar_lea.vmem %s3, %s176
      %s178 = smul.u32 8, %s14
      %p179 = scmp.lt.s32.totalorder %s178, 15
      %s180 = scalar_select %p179, %s178, 15
      %s181 = smul.addr %s180, 4
      %s182 = scalar_lea.vmem %s0, %s181
      %s183 = smul.u32 8, %s14
      %s184 = smul.u32 8, %s14
      %p185 = scmp.lt.s32.totalorder %s184, 15
      %s186 = scalar_select %p185, %s184, 15
      %s187 = smul.addr %s186, 8
      %s188 = scalar_lea.vmem %s2, %s187
      %s189 = smul.u32 8, %s14
      %s190 = smul.u32 8, %s14
      %p191 = scmp.lt.s32.totalorder %s190, 15
      %s192 = scalar_select %p191, %s190, 15
      %s193 = smul.addr %s192, 4
      %s194 = scalar_lea.vmem %s3, %s193
      %s195 = smul.u32 8, %s14
      %v197 = vld [vmem:[%s182] sm:$0xf]
      %v198 = vld [vmem:[%s182 + $0x4] sm:$0xf]
      %v199 = vld [vmem:[%s182 + $0x8] sm:$0xf]
      %v200 = vld [vmem:[%s182 + $0xc] sm:$0xf]
      %v201 = vld [vmem:[%s182 + $0x10] sm:$0xf]
      %v202 = vld [vmem:[%s182 + $0x14] sm:$0xf]
      %v203 = vld [vmem:[%s182 + $0x18] sm:$0xf]
      %v204 = vld [vmem:[%s182 + $0x1c] sm:$0xf]
      %v205 = vld [vmem:[%s1] sm:$0xf]
      %v206 = vld [vmem:[%s1 + $0x4] sm:$0xf]
      %v207 = vld [vmem:[%s1 + $0x8] sm:$0xf]
      %v208 = vld [vmem:[%s1 + $0xc] sm:$0xf]
      %v209 = vld [vmem:[%s1 + $0x10] sm:$0xf]
      %v210 = vld [vmem:[%s1 + $0x14] sm:$0xf]
      %v211 = vld [vmem:[%s1 + $0x18] sm:$0xf]
      %v212 = vld [vmem:[%s1 + $0x1c] sm:$0xf]
      %v221 = vunpack.c.l.b16 %v197
      %v222 = vunpack.c.l.b16 %v198
      %v223 = vunpack.c.l.b16 %v199
      %v224 = vunpack.c.l.b16 %v200
      %v225 = vunpack.c.l.b16 %v201
      %v226 = vunpack.c.l.b16 %v202
      %v227 = vunpack.c.l.b16 %v203
      %v228 = vunpack.c.l.b16 %v204
      %v229 = vpack.c.b16 %v222, %v221
      %v230 = vpack.c.b16 %v224, %v223
      %v231 = vpack.c.b16 %v226, %v225
      %v232 = vpack.c.b16 %v228, %v227
      %v241 = vunpack.c.l.b16 %v205
      %v242 = vunpack.c.l.b16 %v206
      %v243 = vunpack.c.l.b16 %v207
      %v244 = vunpack.c.l.b16 %v208
      %v245 = vunpack.c.l.b16 %v209
      %v246 = vunpack.c.l.b16 %v210
      %v247 = vunpack.c.l.b16 %v211
      %v248 = vunpack.c.l.b16 %v212
      %v249 = vpack.c.b16 %v242, %v241
      %v250 = vpack.c.b16 %v244, %v243
      %v251 = vpack.c.b16 %v246, %v245
      %v252 = vpack.c.b16 %v248, %v247
      %vm257 = vcmask 523264
      %v259 = vsel %vm257, %v229, 0
      %v262 = vsel %vm257, %v230, 0
      %v265 = vsel %vm257, %v231, 0
      %v268 = vsel %vm257, %v232, 0
      %270 = vmatpush.bf16.msra.mxu0 0
      %271 = vmatpush.bf16.msra.mxu0 0
      %272 = vmatpush.bf16.msra.mxu0 0
      %273 = vmatpush.bf16.msra.mxu0 0
      %274 = vmatpush.bf16.msra.mxu0 %v252
      %275 = vmatpush.bf16.msra.mxu0 %v251
      %276 = vmatpush.bf16.msra.mxu0 %v250
      %277 = vmatpush.bf16.msra.mxu0 %v249
      %278 = vmatmul.bf16.gmra.mxu0 %v259
      %v279 = vpop.f32.mrf.mxu0
      %v280 = vadd.f32 0.0, %v279
      %v281 = vpop.f32.mrf.mxu0
      %v282 = vadd.f32 0.0, %v281
      %283 = vmatmul.bf16.gmra.mxu0 %v262
      %v284 = vpop.f32.mrf.mxu0
      %v285 = vadd.f32 0.0, %v284
      %v286 = vpop.f32.mrf.mxu0
      %v287 = vadd.f32 0.0, %v286
      %288 = vmatmul.bf16.gmra.mxu0 %v265
      %v289 = vpop.f32.mrf.mxu0
      %v290 = vadd.f32 0.0, %v289
      %v291 = vpop.f32.mrf.mxu0
      %v292 = vadd.f32 0.0, %v291
      %293 = vmatmul.bf16.gmra.mxu0 %v268
      %v294 = vpop.f32.mrf.mxu0
      %v295 = vadd.f32 0.0, %v294
      %v296 = vpop.f32.mrf.mxu0
      %v297 = vadd.f32 0.0, %v296
      %298 = vdwg.mxu0
      %v299 = vld [vmem:[%s188] sm:$0xff]
      %v300 = vld [vmem:[%s188 + $0x8] sm:$0xff]
      %v301 = vld [vmem:[%s188 + $0x10] sm:$0xff]
      %v302 = vld [vmem:[%s188 + $0x18] sm:$0xff]
      %v303 = vld [vmem:[%s188 + $0x20] sm:$0xff]
      %v304 = vld [vmem:[%s188 + $0x28] sm:$0xff]
      %v305 = vld [vmem:[%s188 + $0x30] sm:$0xff]
      %v306 = vld [vmem:[%s188 + $0x38] sm:$0xff]
      %308 = vset.pattern.permute.xlu0 0
      %309 = vperm.xlu0 %308, %v299
      %v310 = vpop.permute.xlu0 %309
      %313 = vset.pattern.permute.xlu0 0
      %314 = vperm.xlu0 %313, %v300
      %v315 = vpop.permute.xlu0 %314
      %318 = vset.pattern.permute.xlu0 0
      %319 = vperm.xlu0 %318, %v301
      %v320 = vpop.permute.xlu0 %319
      %323 = vset.pattern.permute.xlu0 0
      %324 = vperm.xlu0 %323, %v302
      %v325 = vpop.permute.xlu0 %324
      %328 = vset.pattern.permute.xlu0 0
      %329 = vperm.xlu0 %328, %v303
      %v330 = vpop.permute.xlu0 %329
      %333 = vset.pattern.permute.xlu0 0
      %334 = vperm.xlu0 %333, %v304
      %v335 = vpop.permute.xlu0 %334
      %338 = vset.pattern.permute.xlu0 0
      %339 = vperm.xlu0 %338, %v305
      %v340 = vpop.permute.xlu0 %339
      %343 = vset.pattern.permute.xlu0 0
      %344 = vperm.xlu0 %343, %v306
      %v345 = vpop.permute.xlu0 %344
      %v347 = vmul.f32 %v280, %v310
      %v348 = vmul.f32 %v282, %v315
      %v349 = vmul.f32 %v285, %v320
      %v350 = vmul.f32 %v287, %v325
      %v351 = vmul.f32 %v290, %v330
      %v352 = vmul.f32 %v292, %v335
      %v353 = vmul.f32 %v295, %v340
      %v354 = vmul.f32 %v297, %v345
      %v355 = vpack.c.bf16 %v347, %v347
      %v356 = vpack.c.bf16 %v348, %v348
      %v357 = vpack.c.bf16 %v349, %v349
      %v358 = vpack.c.bf16 %v350, %v350
      %v359 = vpack.c.bf16 %v351, %v351
      %v360 = vpack.c.bf16 %v352, %v352
      %v361 = vpack.c.bf16 %v353, %v353
      %v362 = vpack.c.bf16 %v354, %v354
      %363 = vst [vmem:[%s194] sm:$0xf] %v355
      %364 = vst [vmem:[%s194 + $0x4] sm:$0xf] %v356
      %365 = vst [vmem:[%s194 + $0x8] sm:$0xf] %v357
      %366 = vst [vmem:[%s194 + $0xc] sm:$0xf] %v358
      %367 = vst [vmem:[%s194 + $0x10] sm:$0xf] %v359
      %368 = vst [vmem:[%s194 + $0x14] sm:$0xf] %v360
      %369 = vst [vmem:[%s194 + $0x18] sm:$0xf] %v361
      %370 = vst [vmem:[%s194 + $0x1c] sm:$0xf] %v362
      %s371 = smul.u32 8, %s14
      %p372 = scmp.lt.s32.totalorder %s371, 15
      %s373 = scalar_select %p372, %s371, 15
      %s374 = smul.addr %s373, 4
      %s375 = scalar_lea.vmem %s3, %s374
      // Predicated region
      $region33: #{gcn_forward.6} parent=31 // pred_check
        %p376 = pneg %p105
      $region34: #{gcn_forward.6} parent=31 // pred_check_branch
        %378 = sbr.rel (%p376) target = $region36
      $region35: #{gcn_forward.6} parent=31 // pred_region
        %s379 = smul.u32 8, %s14
      $region36: #{gcn_forward.6} parent=31 // pred_fallthru
        _
    $region32: #{gcn_forward.6} parent=5 // pred_fallthru
      _
    %p380 = scmp.le.s32.totalorder 2, %s9
    // Predicated region
    $region37: #{gcn_forward.6} parent=5 // pred_check
      %p381 = pneg %p380
    $region38: #{gcn_forward.6} parent=5 // pred_check_branch
      %383 = sbr.rel (%p381) target = $region40
    $region39: #{gcn_forward.6} parent=5 // pred_region
      %s384 = ssub.s32 %s9, 2
      // Predicated region
      $region41: #{gcn_forward.6} parent=39 // pred_check
        %p385 = pneg %p111
      $region42: #{gcn_forward.6} parent=39 // pred_check_branch
        %387 = sbr.rel (%p385) target = $region44
      $region43: #{gcn_forward.6} parent=39 // pred_region
        %s388 = smul.u32 8, %s15
        %p389 = scmp.lt.s32.totalorder %s388, 15
        %s390 = scalar_select %p389, %s388, 15
        %s391 = smul.addr %s390, 4
        %s392 = scalar_lea.vmem %s3, %s391
      $region44: #{gcn_forward.6} parent=39 // pred_fallthru
        _
    $region40: #{gcn_forward.6} parent=5 // pred_fallthru
      _
  $region6: #{gcn_forward.6} parent=0 // loop_footer
    %s13 = sadd.s32 1, %s9
  $region7: #{gcn_forward.6} parent=0 // loop_footer_branch
    %8 = sbr.rel target = $region3
  $region8: #{gcn_forward.6} parent=0 // loop_exit
    _

// kernel: gcn_forward.8
$region0: #{gcn_forward.8}
  #allocation0 [shape = 'u32[]', space=smem, size = 0x4, offset = 0x4, fixed_abs, tag = 'smem constant byte address 0x4 - core index']
  #allocation1 [shape = 'u32[72,128]{1,0:T(1,128)}', space=vmem, size = 0x9000, scoped, tag = 'internal scratch']
  %s0 = inlined_call_operand.vmem [shape: bf16[128,128], index: 0, kind: input, shape index: {}]
  %s1 = inlined_call_operand.vmem [shape: bf16[128,128], index: 1, kind: input, shape index: {}]
  %s2 = inlined_call_operand.vmem [shape: f32[128,1], index: 2, kind: input, shape index: {}]
  %s3 = inlined_call_operand.vmem [shape: bf16[128,128], index: 3, kind: output, shape index: {}]
  %s4 = sld [smem:[#allocation0]]
  $region45: #{gcn_forward.8} parent=0
    _
  %s6 = ssub.s32 1, %s4
  %s7 = scalar_select 0, %s6, %s4
  loop: start=0, step=1, limit=4
  $region2: #{gcn_forward.8} parent=0 // loop_pre_header
    _
  $region3: #{gcn_forward.8} parent=0 // loop_header
    %s9 = sphi 0, %s13
    %p10 = scmp.ge.s32.totalorder %s9, 4
    %s19 = sphi 0, %s21
    %s22 = sphi 0, %s19
    %s23 = sphi 0, %s22
    %s39 = sphi 0, %s23
    %s43 = sphi 0, %s43
    %s45 = sphi 0, %s43
    %s46 = sphi 0, %s45
    %s60 = sphi 0, %s46
    %s66 = sphi 0, %s68
    %s69 = sphi 0, %s66
    %s70 = sphi 0, %s69
    %s86 = sphi 0, %s70
    %s92 = sphi 0, %s94
    %s95 = sphi 0, %s92
    %s96 = sphi 0, %s95
    %s112 = sphi 0, %s96
  $region4: #{gcn_forward.8} parent=0 // loop_header_branch
    %12 = sbr.rel (%p10) target = $region8
  $region5: #{gcn_forward.8} parent=0 // loop_body
    %s14 = ssub.s32 %s9, 1
    %s15 = ssub.s32 %s9, 2
    %s16 = sadd.s32 %s9, 1
    %s17 = ssub.s32 %s9, %s16
    %p18 = scmp.eq.s32.totalorder %s17, 0
    %s20 = sadd.s32 %s19, 1
    %s21 = scalar_select %p18, %s19, %s20
    %p24 = pneg %p18
    %p25 = scmp.eq.s32.totalorder %s9, 1
    %p26 = por %p24, %p25
    %p27 = scmp.ne.s32.totalorder %s19, %s22
    %p28 = scmp.eq.s32.totalorder %s9, 0
    %p29 = por %p27, %p28
    %p30 = scmp.ne.s32.totalorder %s19, %s22
    %p31 = scmp.eq.s32.totalorder %s14, 1
    %p32 = por %p30, %p31
    %p33 = scmp.ne.s32.totalorder %s22, %s23
    %p34 = scmp.eq.s32.totalorder %s14, 0
    %p35 = por %p33, %p34
    %p36 = scmp.ne.s32.totalorder %s22, %s23
    %p37 = scmp.eq.s32.totalorder %s15, 1
    %p38 = por %p36, %p37
    %p40 = scmp.ne.s32.totalorder %s23, %s39
    %p41 = scmp.eq.s32.totalorder %s15, 0
    %p42 = por %p40, %p41
    %s44 = sadd.s32 %s43, 1
    %p47 = scmp.eq.s32.totalorder %s9, 1
    %p48 = scmp.ne.s32.totalorder %s43, %s45
    %p49 = scmp.eq.s32.totalorder %s9, 0
    %p50 = por %p48, %p49
    %p51 = scmp.ne.s32.totalorder %s43, %s45
    %p52 = scmp.eq.s32.totalorder %s14, 1
    %p53 = por %p51, %p52
    %p54 = scmp.ne.s32.totalorder %s45, %s46
    %p55 = scmp.eq.s32.totalorder %s14, 0
    %p56 = por %p54, %p55
    %p57 = scmp.ne.s32.totalorder %s45, %s46
    %p58 = scmp.eq.s32.totalorder %s15, 1
    %p59 = por %p57, %p58
    %p61 = scmp.ne.s32.totalorder %s46, %s60
    %p62 = scmp.eq.s32.totalorder %s15, 0
    %p63 = por %p61, %p62
    %s64 = ssub.s32 %s9, %s16
    %p65 = scmp.eq.s32.totalorder %s64, 0
    %s67 = sadd.s32 %s66, 1
    %s68 = scalar_select %p65, %s66, %s67
    %p71 = pneg %p65
    %p72 = scmp.eq.s32.totalorder %s9, 1
    %p73 = por %p71, %p72
    %p74 = scmp.ne.s32.totalorder %s66, %s69
    %p75 = scmp.eq.s32.totalorder %s9, 0
    %p76 = por %p74, %p75
    %p77 = scmp.ne.s32.totalorder %s66, %s69
    %p78 = scmp.eq.s32.totalorder %s14, 1
    %p79 = por %p77, %p78
    %p80 = scmp.ne.s32.totalorder %s69, %s70
    %p81 = scmp.eq.s32.totalorder %s14, 0
    %p82 = por %p80, %p81
    %p83 = scmp.ne.s32.totalorder %s69, %s70
    %p84 = scmp.eq.s32.totalorder %s15, 1
    %p85 = por %p83, %p84
    %p87 = scmp.ne.s32.totalorder %s70, %s86
    %p88 = scmp.eq.s32.totalorder %s15, 0
    %p89 = por %p87, %p88
    %s90 = ssub.s32 %s9, %s16
    %p91 = scmp.eq.s32.totalorder %s90, 0
    %s93 = sadd.s32 %s92, 1
    %s94 = scalar_select %p91, %s92, %s93
    %p97 = pneg %p91
    %p98 = scmp.eq.s32.totalorder %s9, 1
    %p99 = por %p97, %p98
    %p100 = scmp.ne.s32.totalorder %s92, %s95
    %p101 = scmp.eq.s32.totalorder %s9, 0
    %p102 = por %p100, %p101
    %p103 = scmp.ne.s32.totalorder %s92, %s95
    %p104 = scmp.eq.s32.totalorder %s14, 1
    %p105 = por %p103, %p104
    %p106 = scmp.ne.s32.totalorder %s95, %s96
    %p107 = scmp.eq.s32.totalorder %s14, 0
    %p108 = por %p106, %p107
    %p109 = scmp.ne.s32.totalorder %s95, %s96
    %p110 = scmp.eq.s32.totalorder %s15, 1
    %p111 = por %p109, %p110
    %p113 = scmp.ne.s32.totalorder %s96, %s112
    %p114 = scmp.eq.s32.totalorder %s15, 0
    %p115 = por %p113, %p114
    %p116 = scmp.le.s32.totalorder 1, %s9
    %p117 = scmp.lt.s32.totalorder %s9, 3
    %p118 = pnand %p116, %p117
    %p119 = pneg %p118
    // Predicated region
    $region9: #{gcn_forward.8} parent=5 // pred_check
      _
    $region10: #{gcn_forward.8} parent=5 // pred_check_branch
      %121 = sbr.rel (%p118) target = $region12
    $region11: #{gcn_forward.8} parent=5 // pred_region
      %s122 = ssub.s32 %s9, 1
      // Predicated region
      $region13: #{gcn_forward.8} parent=11 // pred_check
        %p123 = pneg %p56
      $region14: #{gcn_forward.8} parent=11 // pred_check_branch
        %125 = sbr.rel (%p123) target = $region16
      $region15: #{gcn_forward.8} parent=11 // pred_region
        _
      $region16: #{gcn_forward.8} parent=11 // pred_fallthru
        _
    $region12: #{gcn_forward.8} parent=5 // pred_fallthru
      _
    %p126 = scmp.lt.s32.totalorder %s9, 2
    // Predicated region
    $region17: #{gcn_forward.8} parent=5 // pred_check
      %p127 = pneg %p126
    $region18: #{gcn_forward.8} parent=5 // pred_check_branch
      %129 = sbr.rel (%p127) target = $region20
    $region19: #{gcn_forward.8} parent=5 // pred_region
      // Predicated region
      $region21: #{gcn_forward.8} parent=19 // pred_check
        %p130 = pneg %p29
      $region22: #{gcn_forward.8} parent=19 // pred_check_branch
        %132 = sbr.rel (%p130) target = $region24
      $region23: #{gcn_forward.8} parent=19 // pred_region
        %s133 = smul.u32 8, %s9
        %p134 = scmp.lt.s32.totalorder %s133, 15
        %s135 = scalar_select %p134, %s133, 15
        %s136 = smul.addr %s135, 4
        %s137 = scalar_lea.vmem %s0, %s136
        %s138 = smul.u32 8, %s9
      $region24: #{gcn_forward.8} parent=19 // pred_fallthru
        _
      // Predicated region
      $region25: #{gcn_forward.8} parent=19 // pred_check
        %p139 = pneg %p76
      $region26: #{gcn_forward.8} parent=19 // pred_check_branch
        %141 = sbr.rel (%p139) target = $region28
      $region27: #{gcn_forward.8} parent=19 // pred_region
        %s142 = smul.u32 8, %s9
        %p143 = scmp.lt.s32.totalorder %s142, 15
        %s144 = scalar_select %p143, %s142, 15
        %s145 = smul.addr %s144, 8
        %s146 = scalar_lea.vmem %s2, %s145
        %s147 = smul.u32 8, %s9
      $region28: #{gcn_forward.8} parent=19 // pred_fallthru
        _
    $region20: #{gcn_forward.8} parent=5 // pred_fallthru
      _
    %p148 = scmp.le.s32.totalorder 1, %s9
    %p149 = scmp.lt.s32.totalorder %s9, 3
    %p150 = pnand %p148, %p149
    %p151 = pneg %p150
    // Predicated region
    $region29: #{gcn_forward.8} parent=5 // pred_check
      _
    $region30: #{gcn_forward.8} parent=5 // pred_check_branch
      %153 = sbr.rel (%p150) target = $region32
    $region31: #{gcn_forward.8} parent=5 // pred_region
      %s154 = ssub.s32 %s9, 1
      %s155 = smul.u32 8, %s14
      %p156 = scmp.lt.s32.totalorder %s155, 15
      %s157 = scalar_select %p156, %s155, 15
      %s158 = smul.addr %s157, 4
      %s159 = scalar_lea.vmem %s0, %s158
      %p160 = pneg %p35
      %p161 = pneg %p32
      %p162 = pneg %p56
      %p163 = pneg %p53
      %s164 = smul.u32 8, %s14
      %p165 = scmp.lt.s32.totalorder %s164, 15
      %s166 = scalar_select %p165, %s164, 15
      %s167 = smul.addr %s166, 8
      %s168 = scalar_lea.vmem %s2, %s167
      %p169 = pneg %p82
      %p170 = pneg %p79
      %p171 = pneg %p108
      %p172 = pneg %p105
      %s173 = smul.u32 8, %s14
      %p174 = scmp.lt.s32.totalorder %s173, 15
      %s175 = scalar_select %p174, %s173, 15
      %s176 = smul.addr %s175, 4
      %s177 = scalar_lea.vmem %s3, %s176
      %s178 = smul.u32 8, %s14
      %p179 = scmp.lt.s32.totalorder %s178, 15
      %s180 = scalar_select %p179, %s178, 15
      %s181 = smul.addr %s180, 4
      %s182 = scalar_lea.vmem %s0, %s181
      %s183 = smul.u32 8, %s14
      %s184 = smul.u32 8, %s14
      %p185 = scmp.lt.s32.totalorder %s184, 15
      %s186 = scalar_select %p185, %s184, 15
      %s187 = smul.addr %s186, 8
      %s188 = scalar_lea.vmem %s2, %s187
      %s189 = smul.u32 8, %s14
      %s190 = smul.u32 8, %s14
      %p191 = scmp.lt.s32.totalorder %s190, 15
      %s192 = scalar_select %p191, %s190, 15
      %s193 = smul.addr %s192, 4
      %s194 = scalar_lea.vmem %s3, %s193
      %s195 = smul.u32 8, %s14
      %v196 = vld [vmem:[%s182] sm:$0xf]
      %v197 = vld [vmem:[%s182 + $0x4] sm:$0xf]
      %v198 = vld [vmem:[%s182 + $0x8] sm:$0xf]
      %v199 = vld [vmem:[%s182 + $0xc] sm:$0xf]
      %v200 = vld [vmem:[%s182 + $0x10] sm:$0xf]
      %v201 = vld [vmem:[%s182 + $0x14] sm:$0xf]
      %v202 = vld [vmem:[%s182 + $0x18] sm:$0xf]
      %v203 = vld [vmem:[%s182 + $0x1c] sm:$0xf]
      %v204 = vld [vmem:[%s1] sm:$0xf]
      %v205 = vld [vmem:[%s1 + $0x4] sm:$0xf]
      %v206 = vld [vmem:[%s1 + $0x8] sm:$0xf]
      %v207 = vld [vmem:[%s1 + $0xc] sm:$0xf]
      %v208 = vld [vmem:[%s1 + $0x10] sm:$0xf]
      %v209 = vld [vmem:[%s1 + $0x14] sm:$0xf]
      %v210 = vld [vmem:[%s1 + $0x18] sm:$0xf]
      %v211 = vld [vmem:[%s1 + $0x1c] sm:$0xf]
      %v212 = vld [vmem:[%s1 + $0x20] sm:$0xf]
      %v213 = vld [vmem:[%s1 + $0x24] sm:$0xf]
      %v214 = vld [vmem:[%s1 + $0x28] sm:$0xf]
      %v215 = vld [vmem:[%s1 + $0x2c] sm:$0xf]
      %v216 = vld [vmem:[%s1 + $0x30] sm:$0xf]
      %v217 = vld [vmem:[%s1 + $0x34] sm:$0xf]
      %v218 = vld [vmem:[%s1 + $0x38] sm:$0xf]
      %v219 = vld [vmem:[%s1 + $0x3c] sm:$0xf]
      %v228 = vunpack.c.l.b16 %v196
      %v229 = vunpack.c.l.b16 %v197
      %v230 = vunpack.c.l.b16 %v198
      %v231 = vunpack.c.l.b16 %v199
      %v232 = vunpack.c.l.b16 %v200
      %v233 = vunpack.c.l.b16 %v201
      %v234 = vunpack.c.l.b16 %v202
      %v235 = vunpack.c.l.b16 %v203
      %v236 = vpack.c.b16 %v229, %v228
      %v237 = vpack.c.b16 %v231, %v230
      %v238 = vpack.c.b16 %v233, %v232
      %v239 = vpack.c.b16 %v235, %v234
      %v260 = vunpack.c.l.b16 %v204
      %v261 = vunpack.c.l.b16 %v205
      %v262 = vunpack.c.l.b16 %v206
      %v263 = vunpack.c.l.b16 %v207
      %v264 = vunpack.c.l.b16 %v208
      %v265 = vunpack.c.l.b16 %v209
      %v266 = vunpack.c.l.b16 %v210
      %v267 = vunpack.c.l.b16 %v211
      %v268 = vunpack.c.l.b16 %v212
      %v269 = vunpack.c.l.b16 %v213
      %v270 = vunpack.c.l.b16 %v214
      %v271 = vunpack.c.l.b16 %v215
      %v272 = vunpack.c.l.b16 %v216
      %v273 = vunpack.c.l.b16 %v217
      %v274 = vunpack.c.l.b16 %v218
      %v275 = vunpack.c.l.b16 %v219
      %v276 = vpack.c.b16 %v261, %v260
      %v277 = vpack.c.b16 %v263, %v262
      %v278 = vpack.c.b16 %v265, %v264
      %v279 = vpack.c.b16 %v267, %v266
      %v280 = vpack.c.b16 %v269, %v268
      %v281 = vpack.c.b16 %v271, %v270
      %v282 = vpack.c.b16 %v273, %v272
      %v283 = vpack.c.b16 %v275, %v274
      %292 = vmatpush.bf16.msra.mxu0 %v283
      %293 = vmatpush.bf16.msra.mxu0 %v282
      %294 = vmatpush.bf16.msra.mxu0 %v281
      %295 = vmatpush.bf16.msra.mxu0 %v280
      %296 = vmatpush.bf16.msra.mxu0 %v279
      %297 = vmatpush.bf16.msra.mxu0 %v278
      %298 = vmatpush.bf16.msra.mxu0 %v277
      %299 = vmatpush.bf16.msra.mxu0 %v276
      %300 = vmatmul.bf16.gmra.mxu0 %v236
      %v301 = vpop.f32.mrf.mxu0
      %v302 = vadd.f32 0.0, %v301
      %v303 = vpop.f32.mrf.mxu0
      %v304 = vadd.f32 0.0, %v303
      %305 = vmatmul.bf16.gmra.mxu0 %v237
      %v306 = vpop.f32.mrf.mxu0
      %v307 = vadd.f32 0.0, %v306
      %v308 = vpop.f32.mrf.mxu0
      %v309 = vadd.f32 0.0, %v308
      %310 = vmatmul.bf16.gmra.mxu0 %v238
      %v311 = vpop.f32.mrf.mxu0
      %v312 = vadd.f32 0.0, %v311
      %v313 = vpop.f32.mrf.mxu0
      %v314 = vadd.f32 0.0, %v313
      %315 = vmatmul.bf16.gmra.mxu0 %v239
      %v316 = vpop.f32.mrf.mxu0
      %v317 = vadd.f32 0.0, %v316
      %v318 = vpop.f32.mrf.mxu0
      %v319 = vadd.f32 0.0, %v318
      %320 = vdwg.mxu0
      %v321 = vld [vmem:[%s188] sm:$0xff]
      %v322 = vld [vmem:[%s188 + $0x8] sm:$0xff]
      %v323 = vld [vmem:[%s188 + $0x10] sm:$0xff]
      %v324 = vld [vmem:[%s188 + $0x18] sm:$0xff]
      %v325 = vld [vmem:[%s188 + $0x20] sm:$0xff]
      %v326 = vld [vmem:[%s188 + $0x28] sm:$0xff]
      %v327 = vld [vmem:[%s188 + $0x30] sm:$0xff]
      %v328 = vld [vmem:[%s188 + $0x38] sm:$0xff]
      %330 = vset.pattern.permute.xlu0 0
      %331 = vperm.xlu0 %330, %v321
      %v332 = vpop.permute.xlu0 %331
      %335 = vset.pattern.permute.xlu0 0
      %336 = vperm.xlu0 %335, %v322
      %v337 = vpop.permute.xlu0 %336
      %340 = vset.pattern.permute.xlu0 0
      %341 = vperm.xlu0 %340, %v323
      %v342 = vpop.permute.xlu0 %341
      %345 = vset.pattern.permute.xlu0 0
      %346 = vperm.xlu0 %345, %v324
      %v347 = vpop.permute.xlu0 %346
      %350 = vset.pattern.permute.xlu0 0
      %351 = vperm.xlu0 %350, %v325
      %v352 = vpop.permute.xlu0 %351
      %355 = vset.pattern.permute.xlu0 0
      %356 = vperm.xlu0 %355, %v326
      %v357 = vpop.permute.xlu0 %356
      %360 = vset.pattern.permute.xlu0 0
      %361 = vperm.xlu0 %360, %v327
      %v362 = vpop.permute.xlu0 %361
      %365 = vset.pattern.permute.xlu0 0
      %366 = vperm.xlu0 %365, %v328
      %v367 = vpop.permute.xlu0 %366
      %v369 = vmul.f32 %v302, %v332
      %v370 = vmul.f32 %v304, %v337
      %v371 = vmul.f32 %v307, %v342
      %v372 = vmul.f32 %v309, %v347
      %v373 = vmul.f32 %v312, %v352
      %v374 = vmul.f32 %v314, %v357
      %v375 = vmul.f32 %v317, %v362
      %v376 = vmul.f32 %v319, %v367
      %v377 = vpack.c.bf16 %v369, %v369
      %v378 = vpack.c.bf16 %v370, %v370
      %v379 = vpack.c.bf16 %v371, %v371
      %v380 = vpack.c.bf16 %v372, %v372
      %v381 = vpack.c.bf16 %v373, %v373
      %v382 = vpack.c.bf16 %v374, %v374
      %v383 = vpack.c.bf16 %v375, %v375
      %v384 = vpack.c.bf16 %v376, %v376
      %385 = vst [vmem:[%s194] sm:$0xf] %v377
      %386 = vst [vmem:[%s194 + $0x4] sm:$0xf] %v378
      %387 = vst [vmem:[%s194 + $0x8] sm:$0xf] %v379
      %388 = vst [vmem:[%s194 + $0xc] sm:$0xf] %v380
      %389 = vst [vmem:[%s194 + $0x10] sm:$0xf] %v381
      %390 = vst [vmem:[%s194 + $0x14] sm:$0xf] %v382
      %391 = vst [vmem:[%s194 + $0x18] sm:$0xf] %v383
      %392 = vst [vmem:[%s194 + $0x1c] sm:$0xf] %v384
      %s393 = smul.u32 8, %s14
      %p394 = scmp.lt.s32.totalorder %s393, 15
      %s395 = scalar_select %p394, %s393, 15
      %s396 = smul.addr %s395, 4
      %s397 = scalar_lea.vmem %s3, %s396
      // Predicated region
      $region33: #{gcn_forward.8} parent=31 // pred_check
        %p398 = pneg %p105
      $region34: #{gcn_forward.8} parent=31 // pred_check_branch
        %400 = sbr.rel (%p398) target = $region36
      $region35: #{gcn_forward.8} parent=31 // pred_region
        %s401 = smul.u32 8, %s14
      $region36: #{gcn_forward.8} parent=31 // pred_fallthru
        _
    $region32: #{gcn_forward.8} parent=5 // pred_fallthru
      _
    %p402 = scmp.le.s32.totalorder 2, %s9
    // Predicated region
    $region37: #{gcn_forward.8} parent=5 // pred_check
      %p403 = pneg %p402
    $region38: #{gcn_forward.8} parent=5 // pred_check_branch
      %405 = sbr.rel (%p403) target = $region40
    $region39: #{gcn_forward.8} parent=5 // pred_region
      %s406 = ssub.s32 %s9, 2
      // Predicated region
      $region41: #{gcn_forward.8} parent=39 // pred_check
        %p407 = pneg %p111
      $region42: #{gcn_forward.8} parent=39 // pred_check_branch
        %409 = sbr.rel (%p407) target = $region44
      $region43: #{gcn_forward.8} parent=39 // pred_region
        %s410 = smul.u32 8, %s15
        %p411 = scmp.lt.s32.totalorder %s410, 15
        %s412 = scalar_select %p411, %s410, 15
        %s413 = smul.addr %s412, 4
        %s414 = scalar_lea.vmem %s3, %s413
      $region44: #{gcn_forward.8} parent=39 // pred_fallthru
        _
    $region40: #{gcn_forward.8} parent=5 // pred_fallthru
      _
  $region6: #{gcn_forward.8} parent=0 // loop_footer
    %s13 = sadd.s32 1, %s9
  $region7: #{gcn_forward.8} parent=0 // loop_footer_branch
    %8 = sbr.rel target = $region3
  $region8: #{gcn_forward.8} parent=0 // loop_exit
    _

// kernel: gcn_forward.7
$region0: #{gcn_forward.7}
  #allocation0 [shape = 'u32[]', space=smem, size = 0x4, offset = 0x4, fixed_abs, tag = 'smem constant byte address 0x4 - core index']
  #allocation1 [shape = 'u32[72,128]{1,0:T(1,128)}', space=vmem, size = 0x9000, scoped, tag = 'internal scratch']
  #allocation2 [shape = 'f32[64,128]{1,0:T(8,128)}', space=vmem, size = 0x8000, scoped, tag = 'scratch operand']
  %s0 = inlined_call_operand.vmem [shape: s8[128,128], index: 0, kind: input, shape index: {}]
  %s1 = inlined_call_operand.vmem [shape: bf16[128,128], index: 1, kind: input, shape index: {}]
  %s2 = inlined_call_operand.vmem [shape: f32[128,1], index: 2, kind: input, shape index: {}]
  %s3 = inlined_call_operand.vmem [shape: f32[1,128], index: 3, kind: input, shape index: {}]
  %s4 = inlined_call_operand.vmem [shape: bf16[128,128], index: 4, kind: output, shape index: {}]
  %s5 = sld [smem:[#allocation0]]
  $region57: #{gcn_forward.7} parent=0
    _
  %s7 = ssub.s32 1, %s5
  %s8 = scalar_select 0, %s7, %s5
  loop: start=0, step=1, limit=4
  $region2: #{gcn_forward.7} parent=0 // loop_pre_header
    _
  $region3: #{gcn_forward.7} parent=0 // loop_header
    %s10 = sphi 0, %s14
    %p11 = scmp.ge.s32.totalorder %s10, 4
    %s17 = sphi 0, %s29
    %s18 = sphi 0, %s25
    %s19 = sphi 0, %s17
    %s20 = sphi 0, %s18
    %s21 = sphi 0, %s19
    %s22 = sphi 0, %s20
    %s34 = sphi 0, %s36
    %s37 = sphi 0, %s34
    %s38 = sphi 0, %s37
    %s54 = sphi 0, %s38
    %s60 = sphi 0, %s62
    %s63 = sphi 0, %s60
    %s64 = sphi 0, %s63
    %s80 = sphi 0, %s64
    %s86 = sphi 0, %s88
    %s89 = sphi 0, %s86
    %s90 = sphi 0, %s89
    %s106 = sphi 0, %s90
    %s110 = sphi 0, %s110
    %s112 = sphi 0, %s110
    %s113 = sphi 0, %s112
    %s127 = sphi 0, %s113
    %s133 = sphi 0, %s135
    %s136 = sphi 0, %s133
    %s137 = sphi 0, %s136
    %s153 = sphi 0, %s137
  $region4: #{gcn_forward.7} parent=0 // loop_header_branch
    %13 = sbr.rel (%p11) target = $region8
  $region5: #{gcn_forward.7} parent=0 // loop_body
    %s15 = ssub.s32 %s10, 1
    %s16 = ssub.s32 %s10, 2
    %s23 = sadd.s32 1, %s18
    %p24 = scmp.ge.s32.totalorder %s23, 1
    %s25 = scalar_select %p24, 0, %s23
    %s26 = sadd.s32 1, %s17
    %s27 = scalar_select %p24, %s26, %s17
    %p28 = scmp.ge.s32.totalorder %s27, 2
    %s29 = scalar_select %p28, 0, %s27
    %s30 = ssub.s32 %s17, %s29
    %s31 = ssub.s32 %s18, %s25
    %s32 = sor.u32 %s30, %s31
    %p33 = scmp.eq.s32.totalorder %s32, 0
    %s35 = sadd.s32 %s34, 1
    %s36 = scalar_select %p33, %s34, %s35
    %p39 = pneg %p33
    %p40 = scmp.eq.s32.totalorder %s10, 1
    %p41 = por %p39, %p40
    %p42 = scmp.ne.s32.totalorder %s34, %s37
    %p43 = scmp.eq.s32.totalorder %s10, 0
    %p44 = por %p42, %p43
    %p45 = scmp.ne.s32.totalorder %s34, %s37
    %p46 = scmp.eq.s32.totalorder %s15, 1
    %p47 = por %p45, %p46
    %p48 = scmp.ne.s32.totalorder %s37, %s38
    %p49 = scmp.eq.s32.totalorder %s15, 0
    %p50 = por %p48, %p49
    %p51 = scmp.ne.s32.totalorder %s37, %s38
    %p52 = scmp.eq.s32.totalorder %s16, 1
    %p53 = por %p51, %p52
    %p55 = scmp.ne.s32.totalorder %s38, %s54
    %p56 = scmp.eq.s32.totalorder %s16, 0
    %p57 = por %p55, %p56
    %s58 = ssub.s32 %s18, %s25
    %p59 = scmp.eq.s32.totalorder %s58, 0
    %s61 = sadd.s32 %s60, 1
    %s62 = scalar_select %p59, %s60, %s61
    %p65 = pneg %p59
    %p66 = scmp.eq.s32.totalorder %s10, 1
    %p67 = por %p65, %p66
    %p68 = scmp.ne.s32.totalorder %s60, %s63
    %p69 = scmp.eq.s32.totalorder %s10, 0
    %p70 = por %p68, %p69
    %p71 = scmp.ne.s32.totalorder %s60, %s63
    %p72 = scmp.eq.s32.totalorder %s15, 1
    %p73 = por %p71, %p72
    %p74 = scmp.ne.s32.totalorder %s63, %s64
    %p75 = scmp.eq.s32.totalorder %s15, 0
    %p76 = por %p74, %p75
    %p77 = scmp.ne.s32.totalorder %s63, %s64
    %p78 = scmp.eq.s32.totalorder %s16, 1
    %p79 = por %p77, %p78
    %p81 = scmp.ne.s32.totalorder %s64, %s80
    %p82 = scmp.eq.s32.totalorder %s16, 0
    %p83 = por %p81, %p82
    %s84 = ssub.s32 %s17, %s29
    %p85 = scmp.eq.s32.totalorder %s84, 0
    %s87 = sadd.s32 %s86, 1
    %s88 = scalar_select %p85, %s86, %s87
    %p91 = pneg %p85
    %p92 = scmp.eq.s32.totalorder %s10, 1
    %p93 = por %p91, %p92
    %p94 = scmp.ne.s32.totalorder %s86, %s89
    %p95 = scmp.eq.s32.totalorder %s10, 0
    %p96 = por %p94, %p95
    %p97 = scmp.ne.s32.totalorder %s86, %s89
    %p98 = scmp.eq.s32.totalorder %s15, 1
    %p99 = por %p97, %p98
    %p100 = scmp.ne.s32.totalorder %s89, %s90
    %p101 = scmp.eq.s32.totalorder %s15, 0
    %p102 = por %p100, %p101
    %p103 = scmp.ne.s32.totalorder %s89, %s90
    %p104 = scmp.eq.s32.totalorder %s16, 1
    %p105 = por %p103, %p104
    %p107 = scmp.ne.s32.totalorder %s90, %s106
    %p108 = scmp.eq.s32.totalorder %s16, 0
    %p109 = por %p107, %p108
    %s111 = sadd.s32 %s110, 1
    %p114 = scmp.eq.s32.totalorder %s10, 1
    %p115 = scmp.ne.s32.totalorder %s110, %s112
    %p116 = scmp.eq.s32.totalorder %s10, 0
    %p117 = por %p115, %p116
    %p118 = scmp.ne.s32.totalorder %s110, %s112
    %p119 = scmp.eq.s32.totalorder %s15, 1
    %p120 = por %p118, %p119
    %p121 = scmp.ne.s32.totalorder %s112, %s113
    %p122 = scmp.eq.s32.totalorder %s15, 0
    %p123 = por %p121, %p122
    %p124 = scmp.ne.s32.totalorder %s112, %s113
    %p125 = scmp.eq.s32.totalorder %s16, 1
    %p126 = por %p124, %p125
    %p128 = scmp.ne.s32.totalorder %s113, %s127
    %p129 = scmp.eq.s32.totalorder %s16, 0
    %p130 = por %p128, %p129
    %s131 = ssub.s32 %s17, %s29
    %p132 = scmp.eq.s32.totalorder %s131, 0
    %s134 = sadd.s32 %s133, 1
    %s135 = scalar_select %p132, %s133, %s134
    %p138 = pneg %p132
    %p139 = scmp.eq.s32.totalorder %s10, 1
    %p140 = por %p138, %p139
    %p141 = scmp.ne.s32.totalorder %s133, %s136
    %p142 = scmp.eq.s32.totalorder %s10, 0
    %p143 = por %p141, %p142
    %p144 = scmp.ne.s32.totalorder %s133, %s136
    %p145 = scmp.eq.s32.totalorder %s15, 1
    %p146 = por %p144, %p145
    %p147 = scmp.ne.s32.totalorder %s136, %s137
    %p148 = scmp.eq.s32.totalorder %s15, 0
    %p149 = por %p147, %p148
    %p150 = scmp.ne.s32.totalorder %s136, %s137
    %p151 = scmp.eq.s32.totalorder %s16, 1
    %p152 = por %p150, %p151
    %p154 = scmp.ne.s32.totalorder %s137, %s153
    %p155 = scmp.eq.s32.totalorder %s16, 0
    %p156 = por %p154, %p155
    %p157 = scmp.le.s32.totalorder 1, %s10
    %p158 = scmp.lt.s32.totalorder %s10, 3
    %p159 = pnand %p157, %p158
    %p160 = pneg %p159
    // Predicated region
    $region9: #{gcn_forward.7} parent=5 // pred_check
      _
    $region10: #{gcn_forward.7} parent=5 // pred_check_branch
      %162 = sbr.rel (%p159) target = $region12
    $region11: #{gcn_forward.7} parent=5 // pred_region
      %s163 = ssub.s32 %s10, 1
      // Predicated region
      $region13: #{gcn_forward.7} parent=11 // pred_check
        %p164 = pneg %p76
      $region14: #{gcn_forward.7} parent=11 // pred_check_branch
        %166 = sbr.rel (%p164) target = $region16
      $region15: #{gcn_forward.7} parent=11 // pred_region
        %s167 = smul.u32 16, %s20
        %p168 = scmp.lt.s32.totalorder %s167, 15
        %s169 = scalar_select %p168, %s167, 15
        %s170 = smul.addr %s169, 4
        %s171 = scalar_lea.vmem %s1, %s170
        %s172 = smul.u32 16, %s20
      $region16: #{gcn_forward.7} parent=11 // pred_fallthru
        _
      // Predicated region
      $region17: #{gcn_forward.7} parent=11 // pred_check
        %p173 = pneg %p123
      $region18: #{gcn_forward.7} parent=11 // pred_check_branch
        %175 = sbr.rel (%p173) target = $region20
      $region19: #{gcn_forward.7} parent=11 // pred_region
        _
      $region20: #{gcn_forward.7} parent=11 // pred_fallthru
        _
    $region12: #{gcn_forward.7} parent=5 // pred_fallthru
      _
    %p176 = scmp.lt.s32.totalorder %s10, 2
    // Predicated region
    $region21: #{gcn_forward.7} parent=5 // pred_check
      %p177 = pneg %p176
    $region22: #{gcn_forward.7} parent=5 // pred_check_branch
      %179 = sbr.rel (%p177) target = $region24
    $region23: #{gcn_forward.7} parent=5 // pred_region
      // Predicated region
      $region25: #{gcn_forward.7} parent=23 // pred_check
        %p180 = pneg %p44
      $region26: #{gcn_forward.7} parent=23 // pred_check_branch
        %182 = sbr.rel (%p180) target = $region28
      $region27: #{gcn_forward.7} parent=23 // pred_region
        %s183 = smul.u32 2, %s17
        %p184 = scmp.lt.s32.totalorder %s183, 3
        %s185 = scalar_select %p184, %s183, 3
        %p186 = scmp.lt.s32.totalorder %s18, 0
        %s187 = scalar_select %p186, %s18, 0
        %s188 = sadd.s32 %s187, %s185
        %s189 = smul.addr %s188, 8
        %s190 = scalar_lea.vmem %s0, %s189
        %s191 = smul.u32 2, %s17
      $region28: #{gcn_forward.7} parent=23 // pred_fallthru
        _
      // Predicated region
      $region29: #{gcn_forward.7} parent=23 // pred_check
        %p192 = pneg %p96
      $region30: #{gcn_forward.7} parent=23 // pred_check_branch
        %194 = sbr.rel (%p192) target = $region32
      $region31: #{gcn_forward.7} parent=23 // pred_region
        %s195 = smul.u32 8, %s17
        %p196 = scmp.lt.s32.totalorder %s195, 15
        %s197 = scalar_select %p196, %s195, 15
        %s198 = smul.addr %s197, 8
        %s199 = scalar_lea.vmem %s2, %s198
        %s200 = smul.u32 8, %s17
      $region32: #{gcn_forward.7} parent=23 // pred_fallthru
        _
    $region24: #{gcn_forward.7} parent=5 // pred_fallthru
      _
    %p201 = scmp.le.s32.totalorder 1, %s10
    %p202 = scmp.lt.s32.totalorder %s10, 3
    %p203 = pnand %p201, %p202
    %p204 = pneg %p203
    // Predicated region
    $region33: #{gcn_forward.7} parent=5 // pred_check
      _
    $region34: #{gcn_forward.7} parent=5 // pred_check_branch
      %206 = sbr.rel (%p203) target = $region36
    $region35: #{gcn_forward.7} parent=5 // pred_region
      %s207 = ssub.s32 %s10, 1
      %s208 = smul.u32 2, %s19
      %p209 = scmp.lt.s32.totalorder %s208, 3
      %s210 = scalar_select %p209, %s208, 3
      %p211 = scmp.lt.s32.totalorder %s20, 0
      %s212 = scalar_select %p211, %s20, 0
      %s213 = sadd.s32 %s212, %s210
      %s214 = smul.addr %s213, 8
      %s215 = scalar_lea.vmem %s0, %s214
      %p216 = pneg %p50
      %p217 = pneg %p47
      %s218 = smul.u32 16, %s20
      %p219 = scmp.lt.s32.totalorder %s218, 15
      %s220 = scalar_select %p219, %s218, 15
      %s221 = smul.addr %s220, 4
      %s222 = scalar_lea.vmem %s1, %s221
      %p223 = pneg %p76
      %p224 = pneg %p73
      %s225 = smul.u32 8, %s19
      %p226 = scmp.lt.s32.totalorder %s225, 15
      %s227 = scalar_select %p226, %s225, 15
      %s228 = smul.addr %s227, 8
      %s229 = scalar_lea.vmem %s2, %s228
      %p230 = pneg %p102
      %p231 = pneg %p99
      %p232 = pneg %p123
      %p233 = pneg %p120
      %p234 = pneg %p149
      %p235 = pneg %p146
      %s236 = smul.u32 8, %s19
      %p237 = scmp.lt.s32.totalorder %s236, 15
      %s238 = scalar_select %p237, %s236, 15
      %s239 = smul.addr %s238, 4
      %s240 = scalar_lea.vmem %s4, %s239
      %s241 = smul.u32 2, %s19
      %p242 = scmp.lt.s32.totalorder %s241, 3
      %s243 = scalar_select %p242, %s241, 3
      %p244 = scmp.lt.s32.totalorder %s20, 0
      %s245 = scalar_select %p244, %s20, 0
      %s246 = sadd.s32 %s245, %s243
      %s247 = smul.addr %s246, 8
      %s248 = scalar_lea.vmem %s0, %s247
      %s249 = smul.u32 2, %s19
      %s250 = smul.u32 16, %s20
      %p251 = scmp.lt.s32.totalorder %s250, 15
      %s252 = scalar_select %p251, %s250, 15
      %s253 = smul.addr %s252, 4
      %s254 = scalar_lea.vmem %s1, %s253
      %s255 = smul.u32 16, %s20
      %s256 = smul.u32 8, %s19
      %p257 = scmp.lt.s32.totalorder %s256, 15
      %s258 = scalar_select %p257, %s256, 15
      %s259 = smul.addr %s258, 8
      %s260 = scalar_lea.vmem %s2, %s259
      %s261 = smul.u32 8, %s19
      %s262 = smul.u32 8, %s19
      %p263 = scmp.lt.s32.totalorder %s262, 15
      %s264 = scalar_select %p263, %s262, 15
      %s265 = smul.addr %s264, 4
      %s266 = scalar_lea.vmem %s4, %s265
      %s267 = smul.u32 8, %s19
      %p268 = scmp.eq.s32.totalorder %s20, 0
      // Predicated region
      $region37: #{gcn_forward.7} parent=35 // pred_check
        %p269 = pneg %p268
      $region38: #{gcn_forward.7} parent=35 // pred_check_branch
        %271 = sbr.rel (%p269) target = $region40
      $region39: #{gcn_forward.7} parent=35 // pred_region
        %272 = vst [vmem:[#allocation2] sm:$0xff] 0.0
        %273 = vst [vmem:[#allocation2 + $0x8] sm:$0xff] 0.0
        %274 = vst [vmem:[#allocation2 + $0x10] sm:$0xff] 0.0
        %275 = vst [vmem:[#allocation2 + $0x18] sm:$0xff] 0.0
        %276 = vst [vmem:[#allocation2 + $0x20] sm:$0xff] 0.0
        %277 = vst [vmem:[#allocation2 + $0x28] sm:$0xff] 0.0
        %278 = vst [vmem:[#allocation2 + $0x30] sm:$0xff] 0.0
        %279 = vst [vmem:[#allocation2 + $0x38] sm:$0xff] 0.0
      $region40: #{gcn_forward.7} parent=35 // pred_fallthru
        _
      %v280 = vld [vmem:[%s248] sm:$0xff]
      %v281 = vld [vmem:[%s248 + $0x8] sm:$0xff]
      %v282 = vunpack.c.0.s8 %v280
      %v283 = vunpack.c.1.s8 %v280
      %v284 = vunpack.c.2.s8 %v280
      %v285 = vunpack.c.3.s8 %v280
      %v286 = vunpack.c.0.s8 %v281
      %v287 = vunpack.c.1.s8 %v281
      %v288 = vunpack.c.2.s8 %v281
      %v289 = vunpack.c.3.s8 %v281
      %v290 = vcvt.s32.f32 %v282
      %v291 = vcvt.s32.f32 %v283
      %v292 = vcvt.s32.f32 %v284
      %v293 = vcvt.s32.f32 %v285
      %v294 = vcvt.s32.f32 %v286
      %v295 = vcvt.s32.f32 %v287
      %v296 = vcvt.s32.f32 %v288
      %v297 = vcvt.s32.f32 %v289
      %v298 = vpack.c.bf16 %v291, %v290
      %v299 = vpack.c.bf16 %v293, %v292
      %v300 = vpack.c.bf16 %v295, %v294
      %v301 = vpack.c.bf16 %v297, %v296
      %v302 = vld [vmem:[#allocation2] sm:$0xff]
      %v303 = vld [vmem:[#allocation2 + $0x8] sm:$0xff]
      %v304 = vld [vmem:[#allocation2 + $0x10] sm:$0xff]
      %v305 = vld [vmem:[#allocation2 + $0x18] sm:$0xff]
      %v306 = vld [vmem:[#allocation2 + $0x20] sm:$0xff]
      %v307 = vld [vmem:[#allocation2 + $0x28] sm:$0xff]
      %v308 = vld [vmem:[#allocation2 + $0x30] sm:$0xff]
      %v309 = vld [vmem:[#allocation2 + $0x38] sm:$0xff]
      %v310 = vld [vmem:[%s254] sm:$0xf]
      %v311 = vld [vmem:[%s254 + $0x4] sm:$0xf]
      %v312 = vld [vmem:[%s254 + $0x8] sm:$0xf]
      %v313 = vld [vmem:[%s254 + $0xc] sm:$0xf]
      %v314 = vld [vmem:[%s254 + $0x10] sm:$0xf]
      %v315 = vld [vmem:[%s254 + $0x14] sm:$0xf]
      %v316 = vld [vmem:[%s254 + $0x18] sm:$0xf]
      %v317 = vld [vmem:[%s254 + $0x1c] sm:$0xf]
      %v318 = vld [vmem:[%s254 + $0x20] sm:$0xf]
      %v319 = vld [vmem:[%s254 + $0x24] sm:$0xf]
      %v320 = vld [vmem:[%s254 + $0x28] sm:$0xf]
      %v321 = vld [vmem:[%s254 + $0x2c] sm:$0xf]
      %v322 = vld [vmem:[%s254 + $0x30] sm:$0xf]
      %v323 = vld [vmem:[%s254 + $0x34] sm:$0xf]
      %v324 = vld [vmem:[%s254 + $0x38] sm:$0xf]
      %v325 = vld [vmem:[%s254 + $0x3c] sm:$0xf]
      %v342 = vunpack.c.l.b16 %v310
      %v343 = vunpack.c.l.b16 %v311
      %v344 = vunpack.c.l.b16 %v312
      %v345 = vunpack.c.l.b16 %v313
      %v346 = vunpack.c.l.b16 %v314
      %v347 = vunpack.c.l.b16 %v315
      %v348 = vunpack.c.l.b16 %v316
      %v349 = vunpack.c.l.b16 %v317
      %v350 = vunpack.c.l.b16 %v318
      %v351 = vunpack.c.l.b16 %v319
      %v352 = vunpack.c.l.b16 %v320
      %v353 = vunpack.c.l.b16 %v321
      %v354 = vunpack.c.l.b16 %v322
      %v355 = vunpack.c.l.b16 %v323
      %v356 = vunpack.c.l.b16 %v324
      %v357 = vunpack.c.l.b16 %v325
      %v358 = vpack.c.b16 %v343, %v342
      %v359 = vpack.c.b16 %v345, %v344
      %v360 = vpack.c.b16 %v347, %v346
      %v361 = vpack.c.b16 %v349, %v348
      %v362 = vpack.c.b16 %v351, %v350
      %v363 = vpack.c.b16 %v353, %v352
      %v364 = vpack.c.b16 %v355, %v354
      %v365 = vpack.c.b16 %v357, %v356
      %374 = vmatpush.bf16.msra.mxu0 %v365
      %375 = vmatpush.bf16.msra.mxu0 %v364
      %376 = vmatpush.bf16.msra.mxu0 %v363
      %377 = vmatpush.bf16.msra.mxu0 %v362
      %378 = vmatpush.bf16.msra.mxu0 %v361
      %379 = vmatpush.bf16.msra.mxu0 %v360
      %380 = vmatpush.bf16.msra.mxu0 %v359
      %381 = vmatpush.bf16.msra.mxu0 %v358
      %382 = vmatmul.bf16.gmra.mxu0 %v298
      %v383 = vpop.f32.mrf.mxu0
      %v384 = vadd.f32 0.0, %v383
      %v385 = vpop.f32.mrf.mxu0
      %v386 = vadd.f32 0.0, %v385
      %387 = vmatmul.bf16.gmra.mxu0 %v299
      %v388 = vpop.f32.mrf.mxu0
      %v389 = vadd.f32 0.0, %v388
      %v390 = vpop.f32.mrf.mxu0
      %v391 = vadd.f32 0.0, %v390
      %392 = vmatmul.bf16.gmra.mxu0 %v300
      %v393 = vpop.f32.mrf.mxu0
      %v394 = vadd.f32 0.0, %v393
      %v395 = vpop.f32.mrf.mxu0
      %v396 = vadd.f32 0.0, %v395
      %397 = vmatmul.bf16.gmra.mxu0 %v301
      %v398 = vpop.f32.mrf.mxu0
      %v399 = vadd.f32 0.0, %v398
      %v400 = vpop.f32.mrf.mxu0
      %v401 = vadd.f32 0.0, %v400
      %402 = vdwg.mxu0
      %v403 = vadd.f32 %v302, %v384
      %v404 = vadd.f32 %v303, %v386
      %v405 = vadd.f32 %v304, %v389
      %v406 = vadd.f32 %v305, %v391
      %v407 = vadd.f32 %v306, %v394
      %v408 = vadd.f32 %v307, %v396
      %v409 = vadd.f32 %v308, %v399
      %v410 = vadd.f32 %v309, %v401
      %411 = vst [vmem:[#allocation2] sm:$0xff] %v403
      %412 = vst [vmem:[#allocation2 + $0x8] sm:$0xff] %v404
      %413 = vst [vmem:[#allocation2 + $0x10] sm:$0xff] %v405
      %414 = vst [vmem:[#allocation2 + $0x18] sm:$0xff] %v406
      %415 = vst [vmem:[#allocation2 + $0x20] sm:$0xff] %v407
      %416 = vst [vmem:[#allocation2 + $0x28] sm:$0xff] %v408
      %417 = vst [vmem:[#allocation2 + $0x30] sm:$0xff] %v409
      %418 = vst [vmem:[#allocation2 + $0x38] sm:$0xff] %v410
      // Predicated region
      $region41: #{gcn_forward.7} parent=35 // pred_check
        %p419 = pneg %p268
      $region42: #{gcn_forward.7} parent=35 // pred_check_branch
        %421 = sbr.rel (%p419) target = $region44
      $region43: #{gcn_forward.7} parent=35 // pred_region
        %v422 = vld [vmem:[%s260] sm:$0xff]
        %v423 = vld [vmem:[%s260 + $0x8] sm:$0xff]
        %v424 = vld [vmem:[%s260 + $0x10] sm:$0xff]
        %v425 = vld [vmem:[%s260 + $0x18] sm:$0xff]
        %v426 = vld [vmem:[%s260 + $0x20] sm:$0xff]
        %v427 = vld [vmem:[%s260 + $0x28] sm:$0xff]
        %v428 = vld [vmem:[%s260 + $0x30] sm:$0xff]
        %v429 = vld [vmem:[%s260 + $0x38] sm:$0xff]
        %v430 = vld [vmem:[#allocation2] sm:$0xff]
        %v431 = vld [vmem:[#allocation2 + $0x8] sm:$0xff]
        %v432 = vld [vmem:[#allocation2 + $0x10] sm:$0xff]
        %v433 = vld [vmem:[#allocation2 + $0x18] sm:$0xff]
        %v434 = vld [vmem:[#allocation2 + $0x20] sm:$0xff]
        %v435 = vld [vmem:[#allocation2 + $0x28] sm:$0xff]
        %v436 = vld [vmem:[#allocation2 + $0x30] sm:$0xff]
        %v437 = vld [vmem:[#allocation2 + $0x38] sm:$0xff]
        %439 = vset.pattern.permute.xlu0 0
        %440 = vperm.xlu0 %439, %v422
        %v441 = vpop.permute.xlu0 %440
        %444 = vset.pattern.permute.xlu0 0
        %445 = vperm.xlu0 %444, %v423
        %v446 = vpop.permute.xlu0 %445
        %449 = vset.pattern.permute.xlu0 0
        %450 = vperm.xlu0 %449, %v424
        %v451 = vpop.permute.xlu0 %450
        %454 = vset.pattern.permute.xlu0 0
        %455 = vperm.xlu0 %454, %v425
        %v456 = vpop.permute.xlu0 %455
        %459 = vset.pattern.permute.xlu0 0
        %460 = vperm.xlu0 %459, %v426
        %v461 = vpop.permute.xlu0 %460
        %464 = vset.pattern.permute.xlu0 0
        %465 = vperm.xlu0 %464, %v427
        %v466 = vpop.permute.xlu0 %465
        %469 = vset.pattern.permute.xlu0 0
        %470 = vperm.xlu0 %469, %v428
        %v471 = vpop.permute.xlu0 %470
        %474 = vset.pattern.permute.xlu0 0
        %475 = vperm.xlu0 %474, %v429
        %v476 = vpop.permute.xlu0 %475
        %v478 = vmul.f32 %v441, %v430
        %v479 = vmul.f32 %v446, %v431
        %v480 = vmul.f32 %v451, %v432
        %v481 = vmul.f32 %v456, %v433
        %v482 = vmul.f32 %v461, %v434
        %v483 = vmul.f32 %v466, %v435
        %v484 = vmul.f32 %v471, %v436
        %v485 = vmul.f32 %v476, %v437
        %v486 = vld [vmem:[%s3] sm:$0x1]
        %v488 = vperm.slane %v486, 0
        %v490 = vadd.f32 %v478, %v488
        %v491 = vadd.f32 %v479, %v488
        %v492 = vadd.f32 %v480, %v488
        %v493 = vadd.f32 %v481, %v488
        %v494 = vadd.f32 %v482, %v488
        %v495 = vadd.f32 %v483, %v488
        %v496 = vadd.f32 %v484, %v488
        %v497 = vadd.f32 %v485, %v488
        %v498 = vpack.c.bf16 %v490, %v490
        %v499 = vpack.c.bf16 %v491, %v491
        %v500 = vpack.c.bf16 %v492, %v492
        %v501 = vpack.c.bf16 %v493, %v493
        %v502 = vpack.c.bf16 %v494, %v494
        %v503 = vpack.c.bf16 %v495, %v495
        %v504 = vpack.c.bf16 %v496, %v496
        %v505 = vpack.c.bf16 %v497, %v497
        %506 = vst [vmem:[%s266] sm:$0xf] %v498
        %507 = vst [vmem:[%s266 + $0x4] sm:$0xf] %v499
        %508 = vst [vmem:[%s266 + $0x8] sm:$0xf] %v500
        %509 = vst [vmem:[%s266 + $0xc] sm:$0xf] %v501
        %510 = vst [vmem:[%s266 + $0x10] sm:$0xf] %v502
        %511 = vst [vmem:[%s266 + $0x14] sm:$0xf] %v503
        %512 = vst [vmem:[%s266 + $0x18] sm:$0xf] %v504
        %513 = vst [vmem:[%s266 + $0x1c] sm:$0xf] %v505
      $region44: #{gcn_forward.7} parent=35 // pred_fallthru
        _
      %s514 = smul.u32 8, %s19
      %p515 = scmp.lt.s32.totalorder %s514, 15
      %s516 = scalar_select %p515, %s514, 15
      %s517 = smul.addr %s516, 4
      %s518 = scalar_lea.vmem %s4, %s517
      // Predicated region
      $region45: #{gcn_forward.7} parent=35 // pred_check
        %p519 = pneg %p146
      $region46: #{gcn_forward.7} parent=35 // pred_check_branch
        %521 = sbr.rel (%p519) target = $region48
      $region47: #{gcn_forward.7} parent=35 // pred_region
        %s522 = smul.u32 8, %s19
      $region48: #{gcn_forward.7} parent=35 // pred_fallthru
        _
    $region36: #{gcn_forward.7} parent=5 // pred_fallthru
      _
    %p523 = scmp.le.s32.totalorder 2, %s10
    // Predicated region
    $region49: #{gcn_forward.7} parent=5 // pred_check
      %p524 = pneg %p523
    $region50: #{gcn_forward.7} parent=5 // pred_check_branch
      %526 = sbr.rel (%p524) target = $region52
    $region51: #{gcn_forward.7} parent=5 // pred_region
      %s527 = ssub.s32 %s10, 2
      // Predicated region
      $region53: #{gcn_forward.7} parent=51 // pred_check
        %p528 = pneg %p152
      $region54: #{gcn_forward.7} parent=51 // pred_check_branch
        %530 = sbr.rel (%p528) target = $region56
      $region55: #{gcn_forward.7} parent=51 // pred_region
        %s531 = smul.u32 8, %s21
        %p532 = scmp.lt.s32.totalorder %s531, 15
        %s533 = scalar_select %p532, %s531, 15
        %s534 = smul.addr %s533, 4
        %s535 = scalar_lea.vmem %s4, %s534
      $region56: #{gcn_forward.7} parent=51 // pred_fallthru
        _
    $region52: #{gcn_forward.7} parent=5 // pred_fallthru
      _
  $region6: #{gcn_forward.7} parent=0 // loop_footer
    %s14 = sadd.s32 1, %s10
  $region7: #{gcn_forward.7} parent=0 // loop_footer_branch
    %9 = sbr.rel target = $region3
  $region8: #{gcn_forward.7} parent=0 // loop_exit
    _

// kernel: gcn_forward.11
$region0: #{gcn_forward.11}
  #allocation0 [shape = 'u32[]', space=smem, size = 0x4, offset = 0x4, fixed_abs, tag = 'smem constant byte address 0x4 - core index']
  #allocation1 [shape = 'u32[72,128]{1,0:T(1,128)}', space=vmem, size = 0x9000, scoped, tag = 'internal scratch']
  #allocation2 [shape = 'f32[64,128]{1,0:T(8,128)}', space=vmem, size = 0x8000, scoped, tag = 'scratch operand']
  %s0 = inlined_call_operand.vmem [shape: s8[128,128], index: 0, kind: input, shape index: {}]
  %s1 = inlined_call_operand.vmem [shape: bf16[128,128], index: 1, kind: input, shape index: {}]
  %s2 = inlined_call_operand.vmem [shape: f32[128,1], index: 2, kind: input, shape index: {}]
  %s3 = inlined_call_operand.vmem [shape: f32[1,128], index: 3, kind: input, shape index: {}]
  %s4 = inlined_call_operand.vmem [shape: f32[128,128], index: 4, kind: output, shape index: {}]
  %s5 = sld [smem:[#allocation0]]
  $region57: #{gcn_forward.11} parent=0
    _
  %s7 = ssub.s32 1, %s5
  %s8 = scalar_select 0, %s7, %s5
  loop: start=0, step=1, limit=4
  $region2: #{gcn_forward.11} parent=0 // loop_pre_header
    _
  $region3: #{gcn_forward.11} parent=0 // loop_header
    %s10 = sphi 0, %s14
    %p11 = scmp.ge.s32.totalorder %s10, 4
    %s17 = sphi 0, %s29
    %s18 = sphi 0, %s25
    %s19 = sphi 0, %s17
    %s20 = sphi 0, %s18
    %s21 = sphi 0, %s19
    %s22 = sphi 0, %s20
    %s34 = sphi 0, %s36
    %s37 = sphi 0, %s34
    %s38 = sphi 0, %s37
    %s54 = sphi 0, %s38
    %s60 = sphi 0, %s62
    %s63 = sphi 0, %s60
    %s64 = sphi 0, %s63
    %s80 = sphi 0, %s64
    %s86 = sphi 0, %s88
    %s89 = sphi 0, %s86
    %s90 = sphi 0, %s89
    %s106 = sphi 0, %s90
    %s110 = sphi 0, %s110
    %s112 = sphi 0, %s110
    %s113 = sphi 0, %s112
    %s127 = sphi 0, %s113
    %s133 = sphi 0, %s135
    %s136 = sphi 0, %s133
    %s137 = sphi 0, %s136
    %s153 = sphi 0, %s137
  $region4: #{gcn_forward.11} parent=0 // loop_header_branch
    %13 = sbr.rel (%p11) target = $region8
  $region5: #{gcn_forward.11} parent=0 // loop_body
    %s15 = ssub.s32 %s10, 1
    %s16 = ssub.s32 %s10, 2
    %s23 = sadd.s32 1, %s18
    %p24 = scmp.ge.s32.totalorder %s23, 1
    %s25 = scalar_select %p24, 0, %s23
    %s26 = sadd.s32 1, %s17
    %s27 = scalar_select %p24, %s26, %s17
    %p28 = scmp.ge.s32.totalorder %s27, 2
    %s29 = scalar_select %p28, 0, %s27
    %s30 = ssub.s32 %s17, %s29
    %s31 = ssub.s32 %s18, %s25
    %s32 = sor.u32 %s30, %s31
    %p33 = scmp.eq.s32.totalorder %s32, 0
    %s35 = sadd.s32 %s34, 1
    %s36 = scalar_select %p33, %s34, %s35
    %p39 = pneg %p33
    %p40 = scmp.eq.s32.totalorder %s10, 1
    %p41 = por %p39, %p40
    %p42 = scmp.ne.s32.totalorder %s34, %s37
    %p43 = scmp.eq.s32.totalorder %s10, 0
    %p44 = por %p42, %p43
    %p45 = scmp.ne.s32.totalorder %s34, %s37
    %p46 = scmp.eq.s32.totalorder %s15, 1
    %p47 = por %p45, %p46
    %p48 = scmp.ne.s32.totalorder %s37, %s38
    %p49 = scmp.eq.s32.totalorder %s15, 0
    %p50 = por %p48, %p49
    %p51 = scmp.ne.s32.totalorder %s37, %s38
    %p52 = scmp.eq.s32.totalorder %s16, 1
    %p53 = por %p51, %p52
    %p55 = scmp.ne.s32.totalorder %s38, %s54
    %p56 = scmp.eq.s32.totalorder %s16, 0
    %p57 = por %p55, %p56
    %s58 = ssub.s32 %s18, %s25
    %p59 = scmp.eq.s32.totalorder %s58, 0
    %s61 = sadd.s32 %s60, 1
    %s62 = scalar_select %p59, %s60, %s61
    %p65 = pneg %p59
    %p66 = scmp.eq.s32.totalorder %s10, 1
    %p67 = por %p65, %p66
    %p68 = scmp.ne.s32.totalorder %s60, %s63
    %p69 = scmp.eq.s32.totalorder %s10, 0
    %p70 = por %p68, %p69
    %p71 = scmp.ne.s32.totalorder %s60, %s63
    %p72 = scmp.eq.s32.totalorder %s15, 1
    %p73 = por %p71, %p72
    %p74 = scmp.ne.s32.totalorder %s63, %s64
    %p75 = scmp.eq.s32.totalorder %s15, 0
    %p76 = por %p74, %p75
    %p77 = scmp.ne.s32.totalorder %s63, %s64
    %p78 = scmp.eq.s32.totalorder %s16, 1
    %p79 = por %p77, %p78
    %p81 = scmp.ne.s32.totalorder %s64, %s80
    %p82 = scmp.eq.s32.totalorder %s16, 0
    %p83 = por %p81, %p82
    %s84 = ssub.s32 %s17, %s29
    %p85 = scmp.eq.s32.totalorder %s84, 0
    %s87 = sadd.s32 %s86, 1
    %s88 = scalar_select %p85, %s86, %s87
    %p91 = pneg %p85
    %p92 = scmp.eq.s32.totalorder %s10, 1
    %p93 = por %p91, %p92
    %p94 = scmp.ne.s32.totalorder %s86, %s89
    %p95 = scmp.eq.s32.totalorder %s10, 0
    %p96 = por %p94, %p95
    %p97 = scmp.ne.s32.totalorder %s86, %s89
    %p98 = scmp.eq.s32.totalorder %s15, 1
    %p99 = por %p97, %p98
    %p100 = scmp.ne.s32.totalorder %s89, %s90
    %p101 = scmp.eq.s32.totalorder %s15, 0
    %p102 = por %p100, %p101
    %p103 = scmp.ne.s32.totalorder %s89, %s90
    %p104 = scmp.eq.s32.totalorder %s16, 1
    %p105 = por %p103, %p104
    %p107 = scmp.ne.s32.totalorder %s90, %s106
    %p108 = scmp.eq.s32.totalorder %s16, 0
    %p109 = por %p107, %p108
    %s111 = sadd.s32 %s110, 1
    %p114 = scmp.eq.s32.totalorder %s10, 1
    %p115 = scmp.ne.s32.totalorder %s110, %s112
    %p116 = scmp.eq.s32.totalorder %s10, 0
    %p117 = por %p115, %p116
    %p118 = scmp.ne.s32.totalorder %s110, %s112
    %p119 = scmp.eq.s32.totalorder %s15, 1
    %p120 = por %p118, %p119
    %p121 = scmp.ne.s32.totalorder %s112, %s113
    %p122 = scmp.eq.s32.totalorder %s15, 0
    %p123 = por %p121, %p122
    %p124 = scmp.ne.s32.totalorder %s112, %s113
    %p125 = scmp.eq.s32.totalorder %s16, 1
    %p126 = por %p124, %p125
    %p128 = scmp.ne.s32.totalorder %s113, %s127
    %p129 = scmp.eq.s32.totalorder %s16, 0
    %p130 = por %p128, %p129
    %s131 = ssub.s32 %s17, %s29
    %p132 = scmp.eq.s32.totalorder %s131, 0
    %s134 = sadd.s32 %s133, 1
    %s135 = scalar_select %p132, %s133, %s134
    %p138 = pneg %p132
    %p139 = scmp.eq.s32.totalorder %s10, 1
    %p140 = por %p138, %p139
    %p141 = scmp.ne.s32.totalorder %s133, %s136
    %p142 = scmp.eq.s32.totalorder %s10, 0
    %p143 = por %p141, %p142
    %p144 = scmp.ne.s32.totalorder %s133, %s136
    %p145 = scmp.eq.s32.totalorder %s15, 1
    %p146 = por %p144, %p145
    %p147 = scmp.ne.s32.totalorder %s136, %s137
    %p148 = scmp.eq.s32.totalorder %s15, 0
    %p149 = por %p147, %p148
    %p150 = scmp.ne.s32.totalorder %s136, %s137
    %p151 = scmp.eq.s32.totalorder %s16, 1
    %p152 = por %p150, %p151
    %p154 = scmp.ne.s32.totalorder %s137, %s153
    %p155 = scmp.eq.s32.totalorder %s16, 0
    %p156 = por %p154, %p155
    %p157 = scmp.le.s32.totalorder 1, %s10
    %p158 = scmp.lt.s32.totalorder %s10, 3
    %p159 = pnand %p157, %p158
    %p160 = pneg %p159
    // Predicated region
    $region9: #{gcn_forward.11} parent=5 // pred_check
      _
    $region10: #{gcn_forward.11} parent=5 // pred_check_branch
      %162 = sbr.rel (%p159) target = $region12
    $region11: #{gcn_forward.11} parent=5 // pred_region
      %s163 = ssub.s32 %s10, 1
      // Predicated region
      $region13: #{gcn_forward.11} parent=11 // pred_check
        %p164 = pneg %p76
      $region14: #{gcn_forward.11} parent=11 // pred_check_branch
        %166 = sbr.rel (%p164) target = $region16
      $region15: #{gcn_forward.11} parent=11 // pred_region
        %s167 = smul.u32 16, %s20
        %p168 = scmp.lt.s32.totalorder %s167, 15
        %s169 = scalar_select %p168, %s167, 15
        %s170 = smul.addr %s169, 4
        %s171 = scalar_lea.vmem %s1, %s170
        %s172 = smul.u32 16, %s20
      $region16: #{gcn_forward.11} parent=11 // pred_fallthru
        _
      // Predicated region
      $region17: #{gcn_forward.11} parent=11 // pred_check
        %p173 = pneg %p123
      $region18: #{gcn_forward.11} parent=11 // pred_check_branch
        %175 = sbr.rel (%p173) target = $region20
      $region19: #{gcn_forward.11} parent=11 // pred_region
        _
      $region20: #{gcn_forward.11} parent=11 // pred_fallthru
        _
    $region12: #{gcn_forward.11} parent=5 // pred_fallthru
      _
    %p176 = scmp.lt.s32.totalorder %s10, 2
    // Predicated region
    $region21: #{gcn_forward.11} parent=5 // pred_check
      %p177 = pneg %p176
    $region22: #{gcn_forward.11} parent=5 // pred_check_branch
      %179 = sbr.rel (%p177) target = $region24
    $region23: #{gcn_forward.11} parent=5 // pred_region
      // Predicated region
      $region25: #{gcn_forward.11} parent=23 // pred_check
        %p180 = pneg %p44
      $region26: #{gcn_forward.11} parent=23 // pred_check_branch
        %182 = sbr.rel (%p180) target = $region28
      $region27: #{gcn_forward.11} parent=23 // pred_region
        %s183 = smul.u32 2, %s17
        %p184 = scmp.lt.s32.totalorder %s183, 3
        %s185 = scalar_select %p184, %s183, 3
        %p186 = scmp.lt.s32.totalorder %s18, 0
        %s187 = scalar_select %p186, %s18, 0
        %s188 = sadd.s32 %s187, %s185
        %s189 = smul.addr %s188, 8
        %s190 = scalar_lea.vmem %s0, %s189
        %s191 = smul.u32 2, %s17
      $region28: #{gcn_forward.11} parent=23 // pred_fallthru
        _
      // Predicated region
      $region29: #{gcn_forward.11} parent=23 // pred_check
        %p192 = pneg %p96
      $region30: #{gcn_forward.11} parent=23 // pred_check_branch
        %194 = sbr.rel (%p192) target = $region32
      $region31: #{gcn_forward.11} parent=23 // pred_region
        %s195 = smul.u32 8, %s17
        %p196 = scmp.lt.s32.totalorder %s195, 15
        %s197 = scalar_select %p196, %s195, 15
        %s198 = smul.addr %s197, 8
        %s199 = scalar_lea.vmem %s2, %s198
        %s200 = smul.u32 8, %s17
      $region32: #{gcn_forward.11} parent=23 // pred_fallthru
        _
    $region24: #{gcn_forward.11} parent=5 // pred_fallthru
      _
    %p201 = scmp.le.s32.totalorder 1, %s10
    %p202 = scmp.lt.s32.totalorder %s10, 3
    %p203 = pnand %p201, %p202
    %p204 = pneg %p203
    // Predicated region
    $region33: #{gcn_forward.11} parent=5 // pred_check
      _
    $region34: #{gcn_forward.11} parent=5 // pred_check_branch
      %206 = sbr.rel (%p203) target = $region36
    $region35: #{gcn_forward.11} parent=5 // pred_region
      %s207 = ssub.s32 %s10, 1
      %s208 = smul.u32 2, %s19
      %p209 = scmp.lt.s32.totalorder %s208, 3
      %s210 = scalar_select %p209, %s208, 3
      %p211 = scmp.lt.s32.totalorder %s20, 0
      %s212 = scalar_select %p211, %s20, 0
      %s213 = sadd.s32 %s212, %s210
      %s214 = smul.addr %s213, 8
      %s215 = scalar_lea.vmem %s0, %s214
      %p216 = pneg %p50
      %p217 = pneg %p47
      %s218 = smul.u32 16, %s20
      %p219 = scmp.lt.s32.totalorder %s218, 15
      %s220 = scalar_select %p219, %s218, 15
      %s221 = smul.addr %s220, 4
      %s222 = scalar_lea.vmem %s1, %s221
      %p223 = pneg %p76
      %p224 = pneg %p73
      %s225 = smul.u32 8, %s19
      %p226 = scmp.lt.s32.totalorder %s225, 15
      %s227 = scalar_select %p226, %s225, 15
      %s228 = smul.addr %s227, 8
      %s229 = scalar_lea.vmem %s2, %s228
      %p230 = pneg %p102
      %p231 = pneg %p99
      %p232 = pneg %p123
      %p233 = pneg %p120
      %p234 = pneg %p149
      %p235 = pneg %p146
      %s236 = smul.u32 8, %s19
      %p237 = scmp.lt.s32.totalorder %s236, 15
      %s238 = scalar_select %p237, %s236, 15
      %s239 = smul.addr %s238, 8
      %s240 = scalar_lea.vmem %s4, %s239
      %s241 = smul.u32 2, %s19
      %p242 = scmp.lt.s32.totalorder %s241, 3
      %s243 = scalar_select %p242, %s241, 3
      %p244 = scmp.lt.s32.totalorder %s20, 0
      %s245 = scalar_select %p244, %s20, 0
      %s246 = sadd.s32 %s245, %s243
      %s247 = smul.addr %s246, 8
      %s248 = scalar_lea.vmem %s0, %s247
      %s249 = smul.u32 2, %s19
      %s250 = smul.u32 16, %s20
      %p251 = scmp.lt.s32.totalorder %s250, 15
      %s252 = scalar_select %p251, %s250, 15
      %s253 = smul.addr %s252, 4
      %s254 = scalar_lea.vmem %s1, %s253
      %s255 = smul.u32 16, %s20
      %s256 = smul.u32 8, %s19
      %p257 = scmp.lt.s32.totalorder %s256, 15
      %s258 = scalar_select %p257, %s256, 15
      %s259 = smul.addr %s258, 8
      %s260 = scalar_lea.vmem %s2, %s259
      %s261 = smul.u32 8, %s19
      %s262 = smul.u32 8, %s19
      %p263 = scmp.lt.s32.totalorder %s262, 15
      %s264 = scalar_select %p263, %s262, 15
      %s265 = smul.addr %s264, 8
      %s266 = scalar_lea.vmem %s4, %s265
      %s267 = smul.u32 8, %s19
      %p268 = scmp.eq.s32.totalorder %s20, 0
      // Predicated region
      $region37: #{gcn_forward.11} parent=35 // pred_check
        %p269 = pneg %p268
      $region38: #{gcn_forward.11} parent=35 // pred_check_branch
        %271 = sbr.rel (%p269) target = $region40
      $region39: #{gcn_forward.11} parent=35 // pred_region
        %272 = vst [vmem:[#allocation2] sm:$0xff] 0.0
        %273 = vst [vmem:[#allocation2 + $0x8] sm:$0xff] 0.0
        %274 = vst [vmem:[#allocation2 + $0x10] sm:$0xff] 0.0
        %275 = vst [vmem:[#allocation2 + $0x18] sm:$0xff] 0.0
        %276 = vst [vmem:[#allocation2 + $0x20] sm:$0xff] 0.0
        %277 = vst [vmem:[#allocation2 + $0x28] sm:$0xff] 0.0
        %278 = vst [vmem:[#allocation2 + $0x30] sm:$0xff] 0.0
        %279 = vst [vmem:[#allocation2 + $0x38] sm:$0xff] 0.0
      $region40: #{gcn_forward.11} parent=35 // pred_fallthru
        _
      %v280 = vld [vmem:[%s248] sm:$0xff]
      %v281 = vld [vmem:[%s248 + $0x8] sm:$0xff]
      %v282 = vunpack.c.0.s8 %v280
      %v283 = vunpack.c.1.s8 %v280
      %v284 = vunpack.c.2.s8 %v280
      %v285 = vunpack.c.3.s8 %v280
      %v286 = vunpack.c.0.s8 %v281
      %v287 = vunpack.c.1.s8 %v281
      %v288 = vunpack.c.2.s8 %v281
      %v289 = vunpack.c.3.s8 %v281
      %v290 = vcvt.s32.f32 %v282
      %v291 = vcvt.s32.f32 %v283
      %v292 = vcvt.s32.f32 %v284
      %v293 = vcvt.s32.f32 %v285
      %v294 = vcvt.s32.f32 %v286
      %v295 = vcvt.s32.f32 %v287
      %v296 = vcvt.s32.f32 %v288
      %v297 = vcvt.s32.f32 %v289
      %v298 = vpack.c.bf16 %v291, %v290
      %v299 = vpack.c.bf16 %v293, %v292
      %v300 = vpack.c.bf16 %v295, %v294
      %v301 = vpack.c.bf16 %v297, %v296
      %v302 = vld [vmem:[#allocation2] sm:$0xff]
      %v303 = vld [vmem:[#allocation2 + $0x8] sm:$0xff]
      %v304 = vld [vmem:[#allocation2 + $0x10] sm:$0xff]
      %v305 = vld [vmem:[#allocation2 + $0x18] sm:$0xff]
      %v306 = vld [vmem:[#allocation2 + $0x20] sm:$0xff]
      %v307 = vld [vmem:[#allocation2 + $0x28] sm:$0xff]
      %v308 = vld [vmem:[#allocation2 + $0x30] sm:$0xff]
      %v309 = vld [vmem:[#allocation2 + $0x38] sm:$0xff]
      %v310 = vld [vmem:[%s254] sm:$0xf]
      %v311 = vld [vmem:[%s254 + $0x4] sm:$0xf]
      %v312 = vld [vmem:[%s254 + $0x8] sm:$0xf]
      %v313 = vld [vmem:[%s254 + $0xc] sm:$0xf]
      %v314 = vld [vmem:[%s254 + $0x10] sm:$0xf]
      %v315 = vld [vmem:[%s254 + $0x14] sm:$0xf]
      %v316 = vld [vmem:[%s254 + $0x18] sm:$0xf]
      %v317 = vld [vmem:[%s254 + $0x1c] sm:$0xf]
      %v318 = vld [vmem:[%s254 + $0x20] sm:$0xf]
      %v319 = vld [vmem:[%s254 + $0x24] sm:$0xf]
      %v320 = vld [vmem:[%s254 + $0x28] sm:$0xf]
      %v321 = vld [vmem:[%s254 + $0x2c] sm:$0xf]
      %v322 = vld [vmem:[%s254 + $0x30] sm:$0xf]
      %v323 = vld [vmem:[%s254 + $0x34] sm:$0xf]
      %v324 = vld [vmem:[%s254 + $0x38] sm:$0xf]
      %v325 = vld [vmem:[%s254 + $0x3c] sm:$0xf]
      %v342 = vunpack.c.l.b16 %v310
      %v343 = vunpack.c.l.b16 %v311
      %v344 = vunpack.c.l.b16 %v312
      %v345 = vunpack.c.l.b16 %v313
      %v346 = vunpack.c.l.b16 %v314
      %v347 = vunpack.c.l.b16 %v315
      %v348 = vunpack.c.l.b16 %v316
      %v349 = vunpack.c.l.b16 %v317
      %v350 = vunpack.c.l.b16 %v318
      %v351 = vunpack.c.l.b16 %v319
      %v352 = vunpack.c.l.b16 %v320
      %v353 = vunpack.c.l.b16 %v321
      %v354 = vunpack.c.l.b16 %v322
      %v355 = vunpack.c.l.b16 %v323
      %v356 = vunpack.c.l.b16 %v324
      %v357 = vunpack.c.l.b16 %v325
      %v358 = vpack.c.b16 %v343, %v342
      %v359 = vpack.c.b16 %v345, %v344
      %v360 = vpack.c.b16 %v347, %v346
      %v361 = vpack.c.b16 %v349, %v348
      %v362 = vpack.c.b16 %v351, %v350
      %v363 = vpack.c.b16 %v353, %v352
      %v364 = vpack.c.b16 %v355, %v354
      %v365 = vpack.c.b16 %v357, %v356
      %374 = vmatpush.bf16.msra.mxu0 %v365
      %375 = vmatpush.bf16.msra.mxu0 %v364
      %376 = vmatpush.bf16.msra.mxu0 %v363
      %377 = vmatpush.bf16.msra.mxu0 %v362
      %378 = vmatpush.bf16.msra.mxu0 %v361
      %379 = vmatpush.bf16.msra.mxu0 %v360
      %380 = vmatpush.bf16.msra.mxu0 %v359
      %381 = vmatpush.bf16.msra.mxu0 %v358
      %382 = vmatmul.bf16.gmra.mxu0 %v298
      %v383 = vpop.f32.mrf.mxu0
      %v384 = vadd.f32 0.0, %v383
      %v385 = vpop.f32.mrf.mxu0
      %v386 = vadd.f32 0.0, %v385
      %387 = vmatmul.bf16.gmra.mxu0 %v299
      %v388 = vpop.f32.mrf.mxu0
      %v389 = vadd.f32 0.0, %v388
      %v390 = vpop.f32.mrf.mxu0
      %v391 = vadd.f32 0.0, %v390
      %392 = vmatmul.bf16.gmra.mxu0 %v300
      %v393 = vpop.f32.mrf.mxu0
      %v394 = vadd.f32 0.0, %v393
      %v395 = vpop.f32.mrf.mxu0
      %v396 = vadd.f32 0.0, %v395
      %397 = vmatmul.bf16.gmra.mxu0 %v301
      %v398 = vpop.f32.mrf.mxu0
      %v399 = vadd.f32 0.0, %v398
      %v400 = vpop.f32.mrf.mxu0
      %v401 = vadd.f32 0.0, %v400
      %402 = vdwg.mxu0
      %v403 = vadd.f32 %v302, %v384
      %v404 = vadd.f32 %v303, %v386
      %v405 = vadd.f32 %v304, %v389
      %v406 = vadd.f32 %v305, %v391
      %v407 = vadd.f32 %v306, %v394
      %v408 = vadd.f32 %v307, %v396
      %v409 = vadd.f32 %v308, %v399
      %v410 = vadd.f32 %v309, %v401
      %411 = vst [vmem:[#allocation2] sm:$0xff] %v403
      %412 = vst [vmem:[#allocation2 + $0x8] sm:$0xff] %v404
      %413 = vst [vmem:[#allocation2 + $0x10] sm:$0xff] %v405
      %414 = vst [vmem:[#allocation2 + $0x18] sm:$0xff] %v406
      %415 = vst [vmem:[#allocation2 + $0x20] sm:$0xff] %v407
      %416 = vst [vmem:[#allocation2 + $0x28] sm:$0xff] %v408
      %417 = vst [vmem:[#allocation2 + $0x30] sm:$0xff] %v409
      %418 = vst [vmem:[#allocation2 + $0x38] sm:$0xff] %v410
      // Predicated region
      $region41: #{gcn_forward.11} parent=35 // pred_check
        %p419 = pneg %p268
      $region42: #{gcn_forward.11} parent=35 // pred_check_branch
        %421 = sbr.rel (%p419) target = $region44
      $region43: #{gcn_forward.11} parent=35 // pred_region
        %v422 = vld [vmem:[%s260] sm:$0xff]
        %v423 = vld [vmem:[%s260 + $0x8] sm:$0xff]
        %v424 = vld [vmem:[%s260 + $0x10] sm:$0xff]
        %v425 = vld [vmem:[%s260 + $0x18] sm:$0xff]
        %v426 = vld [vmem:[%s260 + $0x20] sm:$0xff]
        %v427 = vld [vmem:[%s260 + $0x28] sm:$0xff]
        %v428 = vld [vmem:[%s260 + $0x30] sm:$0xff]
        %v429 = vld [vmem:[%s260 + $0x38] sm:$0xff]
        %v430 = vld [vmem:[#allocation2] sm:$0xff]
        %v431 = vld [vmem:[#allocation2 + $0x8] sm:$0xff]
        %v432 = vld [vmem:[#allocation2 + $0x10] sm:$0xff]
        %v433 = vld [vmem:[#allocation2 + $0x18] sm:$0xff]
        %v434 = vld [vmem:[#allocation2 + $0x20] sm:$0xff]
        %v435 = vld [vmem:[#allocation2 + $0x28] sm:$0xff]
        %v436 = vld [vmem:[#allocation2 + $0x30] sm:$0xff]
        %v437 = vld [vmem:[#allocation2 + $0x38] sm:$0xff]
        %439 = vset.pattern.permute.xlu0 0
        %440 = vperm.xlu0 %439, %v422
        %v441 = vpop.permute.xlu0 %440
        %444 = vset.pattern.permute.xlu0 0
        %445 = vperm.xlu0 %444, %v423
        %v446 = vpop.permute.xlu0 %445
        %449 = vset.pattern.permute.xlu0 0
        %450 = vperm.xlu0 %449, %v424
        %v451 = vpop.permute.xlu0 %450
        %454 = vset.pattern.permute.xlu0 0
        %455 = vperm.xlu0 %454, %v425
        %v456 = vpop.permute.xlu0 %455
        %459 = vset.pattern.permute.xlu0 0
        %460 = vperm.xlu0 %459, %v426
        %v461 = vpop.permute.xlu0 %460
        %464 = vset.pattern.permute.xlu0 0
        %465 = vperm.xlu0 %464, %v427
        %v466 = vpop.permute.xlu0 %465
        %469 = vset.pattern.permute.xlu0 0
        %470 = vperm.xlu0 %469, %v428
        %v471 = vpop.permute.xlu0 %470
        %474 = vset.pattern.permute.xlu0 0
        %475 = vperm.xlu0 %474, %v429
        %v476 = vpop.permute.xlu0 %475
        %v478 = vmul.f32 %v441, %v430
        %v479 = vmul.f32 %v446, %v431
        %v480 = vmul.f32 %v451, %v432
        %v481 = vmul.f32 %v456, %v433
        %v482 = vmul.f32 %v461, %v434
        %v483 = vmul.f32 %v466, %v435
        %v484 = vmul.f32 %v471, %v436
        %v485 = vmul.f32 %v476, %v437
        %v486 = vld [vmem:[%s3] sm:$0x1]
        %v488 = vperm.slane %v486, 0
        %v490 = vadd.f32 %v478, %v488
        %v491 = vadd.f32 %v479, %v488
        %v492 = vadd.f32 %v480, %v488
        %v493 = vadd.f32 %v481, %v488
        %v494 = vadd.f32 %v482, %v488
        %v495 = vadd.f32 %v483, %v488
        %v496 = vadd.f32 %v484, %v488
        %v497 = vadd.f32 %v485, %v488
        %498 = vst [vmem:[%s266] sm:$0xff] %v490
        %499 = vst [vmem:[%s266 + $0x8] sm:$0xff] %v491
        %500 = vst [vmem:[%s266 + $0x10] sm:$0xff] %v492
        %501 = vst [vmem:[%s266 + $0x18] sm:$0xff] %v493
        %502 = vst [vmem:[%s266 + $0x20] sm:$0xff] %v494
        %503 = vst [vmem:[%s266 + $0x28] sm:$0xff] %v495
        %504 = vst [vmem:[%s266 + $0x30] sm:$0xff] %v496
        %505 = vst [vmem:[%s266 + $0x38] sm:$0xff] %v497
      $region44: #{gcn_forward.11} parent=35 // pred_fallthru
        _
      %s506 = smul.u32 8, %s19
      %p507 = scmp.lt.s32.totalorder %s506, 15
      %s508 = scalar_select %p507, %s506, 15
      %s509 = smul.addr %s508, 8
      %s510 = scalar_lea.vmem %s4, %s509
      // Predicated region
      $region45: #{gcn_forward.11} parent=35 // pred_check
        %p511 = pneg %p146
      $region46: #{gcn_forward.11} parent=35 // pred_check_branch
        %513 = sbr.rel (%p511) target = $region48
      $region47: #{gcn_forward.11} parent=35 // pred_region
        %s514 = smul.u32 8, %s19
      $region48: #{gcn_forward.11} parent=35 // pred_fallthru
        _
    $region36: #{gcn_forward.11} parent=5 // pred_fallthru
      _
    %p515 = scmp.le.s32.totalorder 2, %s10
    // Predicated region
    $region49: #{gcn_forward.11} parent=5 // pred_check
      %p516 = pneg %p515
    $region50: #{gcn_forward.11} parent=5 // pred_check_branch
      %518 = sbr.rel (%p516) target = $region52
    $region51: #{gcn_forward.11} parent=5 // pred_region
      %s519 = ssub.s32 %s10, 2
      // Predicated region
      $region53: #{gcn_forward.11} parent=51 // pred_check
        %p520 = pneg %p152
      $region54: #{gcn_forward.11} parent=51 // pred_check_branch
        %522 = sbr.rel (%p520) target = $region56
      $region55: #{gcn_forward.11} parent=51 // pred_region
        %s523 = smul.u32 8, %s21
        %p524 = scmp.lt.s32.totalorder %s523, 15
        %s525 = scalar_select %p524, %s523, 15
        %s526 = smul.addr %s525, 8
        %s527 = scalar_lea.vmem %s4, %s526
      $region56: #{gcn_forward.11} parent=51 // pred_fallthru
        _
    $region52: #{gcn_forward.11} parent=5 // pred_fallthru
      _
  $region6: #{gcn_forward.11} parent=0 // loop_footer
    %s14 = sadd.s32 1, %s10
  $region7: #{gcn_forward.11} parent=0 // loop_footer_branch
    %9 = sbr.rel target = $region3
  $region8: #{gcn_forward.11} parent=0 // loop_exit
    _

</llo_original>
